<compile_context>
chip_gen: v5e
topology: v5e:2x2
jax: 0.10.0
libtpu: 0.0.40
codegen_flags: <defaults>
</compile_context>

<pallas_src>
import functools

import jax
import jax.numpy as jnp
from jax import lax
from jax.experimental import pallas as pl
from jax.experimental.pallas import tpu as pltpu


def _bilstm_kernel(xbig_ref,      # (T*Bp, 2I)   rows = [x_t | x_{T-1-t}], mxu_dtype
                   wbig_ref,      # (2I, 8H)     both directions' W_ih, interleaved gate cols
                   b_ref,         # (1, 8H)      fused biases (f32)
                   whh_ref,       # (2H, 8H)     both directions' W_hh, interleaved gate cols (f32)
                   wlin_f_ref,    # (H, Opad)    Linear weight, forward half (mxu_dtype)
                   wlin_r_ref,    # (H, Opad)    Linear weight, reverse half (mxu_dtype)
                   b_lin_ref,     # (1, Opad)    Linear bias (f32)
                   out_ref,       # (T*Bp, Opad) f32, lane-dense (Opad % 128 == 0)
                   xg_ref,        # scratch (T*Bp, 8H) f32: hoisted input projections
                   rec_f_ref,     # scratch (T*Bp, H)  f32: forward hidden history (time order)
                   rec_r_ref,     # scratch (T*Bp, H)  f32: reverse hidden history (time order)
                   *, T, B, H):
    f32 = jnp.float32
    H2, H4, H6, H8 = 2 * H, 4 * H, 6 * H, 8 * H

    # ---- 1) hoisted input projections: ONE big MXU GEMM covers both directions ----
    # (bf16 operands by default, f32 accumulate; stored f32 in scratch.)
    xg_ref[...] = (jnp.dot(xbig_ref[...], wbig_ref[...], preferred_element_type=f32)
                   + b_ref[...])

    # Loop invariants, hoisted out of the recurrence.
    whh = whh_ref[...]                                                   # (2H, 8H) f32
    # Gate column layout: [i_f,i_r | f_f,f_r | o_f,o_r | g_f,g_r]; sigmoid on the
    # first 6H lanes, tanh on the last 2H lanes.
    sig_mask = lax.broadcasted_iota(jnp.int32, (B, H8), 1) < H6

    def step(s, carry):
        h2, c2 = carry                                                   # (B, 2H) f32 each
        start_f = pl.multiple_of(s * B, 8)            # B is padded to a multiple of 8
        start_r = pl.multiple_of((T - 1 - s) * B, 8)

        gx = xg_ref[pl.ds(start_f, B), :]             # (B, 8H) -- every lane is used
        # ---- 2) one fused recurrent matmul per step, no concat/cast on the carry ----
        gates = jnp.dot(h2, whh, preferred_element_type=f32) + gx        # (B, 8H) f32

        # ---- 3) full-vreg EUP: sigmoid/tanh over the whole (B, 8H), lane-mask merge ----
        # (Switch sigmoid to exp + pl.reciprocal(approx=True) only if EUP becomes the
        #  binding unit at large B; exact form kept here for accuracy.)
        act = jnp.where(sig_mask, jax.nn.sigmoid(gates), jnp.tanh(gates))
        i2 = act[:, :H2]          # [sig(i_f) | sig(i_r)]
        f2 = act[:, H2:H4]        # [sig(f_f) | sig(f_r)]
        o2 = act[:, H4:H6]        # [sig(o_f) | sig(o_r)]
        g2 = act[:, H6:]          # [tanh(g_f) | tanh(g_r)]

        c2 = f2 * c2 + i2 * g2
        h2 = o2 * jnp.tanh(c2)

        # Histories in original time order (forward at t=s, reverse at t=T-1-s).
        rec_f_ref[pl.ds(start_f, B), :] = h2[:, :H]
        rec_r_ref[pl.ds(start_r, B), :] = h2[:, H:]
        return h2, c2

    zeros = jnp.zeros((B, H2), f32)
    unroll = T if T <= 16 else 4                       # fully unroll small static T
    lax.fori_loop(0, T, step, (zeros, zeros), unroll=unroll)

    # ---- 4) epilogue: lane-dense Linear over concat([h_f, h_r]) as two GEMMs ----
    out_ref[...] = (
        jnp.dot(rec_f_ref[...].astype(wlin_f_ref.dtype), wlin_f_ref[...],
                preferred_element_type=f32)
        + jnp.dot(rec_r_ref[...].astype(wlin_r_ref.dtype), wlin_r_ref[...],
                  preferred_element_type=f32)
        + b_lin_ref[...])


# ----------------------------- wrapper-side plumbing -----------------------------
def _gate_blocks(w):
    """PyTorch gate order along the 4H axis is [i, f, g, o]; return (i, f, o, g)."""
    i, f, g, o = jnp.split(w, 4, axis=-1)
    return (i, f, o, g)


def _interleave(a_blocks, b_blocks):
    """Interleave per-gate blocks of two directions -> [a_i,b_i,a_f,b_f,a_o,b_o,a_g,b_g]."""
    parts = []
    for a, b in zip(a_blocks, b_blocks):
        parts.append(a)
        parts.append(b)
    return jnp.concatenate(parts, axis=-1)


def bidirectional_lstm(x, params, *, mxu_dtype=jnp.bfloat16):
    """x: (T, B, I) float32.  params are PyTorch-shaped tensors."""
    T, B, I = x.shape
    H = params["weight_hh_l0"].shape[1]
    O = params["linear_weight"].shape[0]
    f32 = jnp.float32

    Bp = ((B + 7) // 8) * 8                       # sublane-align the batch
    O_pad = max(128, ((O + 127) // 128) * 128)    # lane-dense output

    # Pad batch, build [x_t | x_{T-1-t}] rows so each loop step reads one row slab.
    x_p = x if Bp == B else jnp.pad(x, ((0, 0), (0, Bp - B), (0, 0)))
    x_fwd = x_p.reshape(T * Bp, I)
    x_rev = x_p[::-1].reshape(T * Bp, I)
    x_big = jnp.concatenate([x_fwd, x_rev], axis=1).astype(mxu_dtype)       # (T*Bp, 2I)

    # Combined input weight: top rows feed forward gate columns, bottom rows reverse.
    blk_ih_f = _gate_blocks(params["weight_ih_l0"].T)                       # 4 x (I, H)
    blk_ih_r = _gate_blocks(params["weight_ih_l0_reverse"].T)
    z_ih = (jnp.zeros((I, H), f32),) * 4
    w_big = jnp.concatenate([_interleave(blk_ih_f, z_ih),
                             _interleave(z_ih, blk_ih_r)], axis=0).astype(mxu_dtype)  # (2I, 8H)

    # Combined recurrent weight for the fused (B, 2H) state (kept f32 for accuracy).
    blk_hh_f = _gate_blocks(params["weight_hh_l0"].T)                       # 4 x (H, H)
    blk_hh_r = _gate_blocks(params["weight_hh_l0_reverse"].T)
    z_hh = (jnp.zeros((H, H), f32),) * 4
    whh = jnp.concatenate([_interleave(blk_hh_f, z_hh),
                           _interleave(z_hh, blk_hh_r)], axis=0).astype(f32)  # (2H, 8H)

    # Fused biases in the interleaved gate-column layout.
    b_f = _gate_blocks((params["bias_ih_l0"] + params["bias_hh_l0"])[None, :])
    b_r = _gate_blocks((params["bias_ih_l0_reverse"] + params["bias_hh_l0_reverse"])[None, :])
    b_comb = _interleave(b_f, b_r).astype(f32)                              # (1, 8H)

    # Linear weights, split per direction and zero-padded to a lane-dense O.
    wlin = params["linear_weight"].T.astype(f32)                            # (2H, O)
    wlin_f = jnp.zeros((H, O_pad), f32).at[:, :O].set(wlin[:H]).astype(mxu_dtype)
    wlin_r = jnp.zeros((H, O_pad), f32).at[:, :O].set(wlin[H:]).astype(mxu_dtype)
    b_lin = jnp.zeros((1, O_pad), f32).at[0, :O].set(params["linear_bias"])

    # VMEM footprint (scratch kept f32: packed-dtype dynamic-row scratch access at
    # small, non-tile-aligned B is a lowering risk; bf16 scratch is a TODO above).
    it = jnp.dtype(mxu_dtype).itemsize
    footprint = (T * Bp * 2 * I * it            # x_big
                 + 2 * I * 8 * H * it           # w_big
                 + 8 * H * 4                    # bias
                 + 2 * H * 8 * H * 4            # whh
                 + 2 * H * O_pad * it           # wlin_f + wlin_r
                 + O_pad * 4                    # b_lin
                 + T * Bp * O_pad * 4           # out
                 + T * Bp * 8 * H * 4           # xg scratch
                 + 2 * T * Bp * H * 4)          # rec scratch
    vmem_limit = int(min(64 * 2**20, max(16 * 2**20, 3 * footprint)))

    cost = pl.CostEstimate(
        flops=int(2 * T * Bp * (2 * I * 8 * H + 2 * H * 8 * H + 2 * H * O_pad)),
        transcendentals=int(T * Bp * (2 * 8 * H + 2 * H)),
        bytes_accessed=int(footprint),
    )

    out_flat = pl.pallas_call(
        functools.partial(_bilstm_kernel, T=T, B=Bp, H=H),
        out_shape=jax.ShapeDtypeStruct((T * Bp, O_pad), f32),
        scratch_shapes=[
            pltpu.VMEM((T * Bp, 8 * H), f32),   # xg: hoisted input projections
            pltpu.VMEM((T * Bp, H), f32),       # forward hidden history
            pltpu.VMEM((T * Bp, H), f32),       # reverse hidden history
        ],
        compiler_params=pltpu.CompilerParams(vmem_limit_bytes=vmem_limit),
        cost_estimate=cost,
    )(x_big, w_big, b_comb, whh, wlin_f, wlin_r, b_lin)

    return out_flat.reshape(T, Bp, O_pad)[:, :B, :O]


# ----------------------- pure-JAX reference (for checking) -----------------------
def _lstm_direction_ref(x, wih, whh, b_ih, b_hh, reverse):
    T, B, I = x.shape
    H = whh.shape[1]

    def step(carry, x_t):
        h, c = carry
        gates = x_t @ wih.T + h @ whh.T + b_ih + b_hh
        i, f, g, o = jnp.split(gates, 4, axis=-1)
        i = jax.nn.sigmoid(i)
        f = jax.nn.sigmoid(f)
        g = jnp.tanh(g)
        o = jax.nn.sigmoid(o)
        c = f * c + i * g
        h = o * jnp.tanh(c)
        return (h, c), h

    h0 = jnp.zeros((B, H), jnp.float32)
    c0 = jnp.zeros((B, H), jnp.float32)
    _, hs = lax.scan(step, (h0, c0), x, reverse=reverse)
    return hs  # (T, B, H), original time order


def bidirectional_lstm_ref(x, p):
    h_f = _lstm_direction_ref(x, p["weight_ih_l0"], p["weight_hh_l0"],
                              p["bias_ih_l0"], p["bias_hh_l0"], reverse=False)
    h_r = _lstm_direction_ref(x, p["weight_ih_l0_reverse"], p["weight_hh_l0_reverse"],
                              p["bias_ih_l0_reverse"], p["bias_hh_l0_reverse"], reverse=True)
    rec = jnp.concatenate([h_f, h_r], axis=-1)             # (T, B, 2H)
    T, B, twoH = rec.shape
    out = rec.reshape(T * B, twoH) @ p["linear_weight"].T + p["linear_bias"]
    return out.reshape(T, B, -1)


def init_params(key, inputs_size, hidden_size, output_size):
    """Deterministic synthetic init, PyTorch LSTM-style uniform(-1/sqrt(H), 1/sqrt(H))."""
    k = 1.0 / jnp.sqrt(jnp.float32(hidden_size))
    names_shapes = [
        ("weight_ih_l0", (4 * hidden_size, inputs_size)),
        ("weight_hh_l0", (4 * hidden_size, hidden_size)),
        ("bias_ih_l0", (4 * hidden_size,)),
        ("bias_hh_l0", (4 * hidden_size,)),
        ("weight_ih_l0_reverse", (4 * hidden_size, inputs_size)),
        ("weight_hh_l0_reverse", (4 * hidden_size, hidden_size)),
        ("bias_ih_l0_reverse", (4 * hidden_size,)),
        ("bias_hh_l0_reverse", (4 * hidden_size,)),
        ("linear_weight", (output_size, 2 * hidden_size)),
        ("linear_bias", (output_size,)),
    ]
    keys = jax.random.split(key, len(names_shapes))
    params = {}
    for subkey, (name, shape) in zip(keys, names_shapes):
        params[name] = jax.random.uniform(subkey, shape, jnp.float32, -k, k)
    return params


if __name__ == "__main__":
    T, B, I, H, O = 8, 4, 16, 32, 16   # seq_len, batch, inputs_size, hidden_size, output_size

    key = jax.random.PRNGKey(0)
    key_x, key_p = jax.random.split(key)
    x = jax.random.normal(key_x, (T, B, I), dtype=jnp.float32)
    params = init_params(key_p, I, H, O)

    ref = jax.block_until_ready(bidirectional_lstm_ref(x, params))

    # Full-f32 MXU path: tight check of algorithmic correctness.
    out_f32 = jax.block_until_ready(bidirectional_lstm(x, params, mxu_dtype=jnp.float32))
    err_f32 = float(jnp.max(jnp.abs(out_f32 - ref)))
    assert out_f32.shape == (T, B, O), out_f32.shape
    assert err_f32 < 2e-3, f"f32 path mismatch vs reference: {err_f32}"

    # Default bf16 MXU operands (f32 gates/cell/accumulation): looser tolerance
    # accounts for bf16 rounding of the projection / epilogue operands.
    out_bf16 = jax.block_until_ready(bidirectional_lstm(x, params))
    err_bf16 = float(jnp.max(jnp.abs(out_bf16 - ref)))
    assert out_bf16.shape == (T, B, O), out_bf16.shape
    assert err_bf16 < 2e-2, f"bf16 path mismatch vs reference: {err_bf16}"

    print("KERNEL_OK")
</pallas_src>

<mosaic_0001>
module attributes {stable_mosaic.version = 11 : i64} {
  func.func @_bilstm_kernel(%arg0: memref<64x32xf32, #tpu.memory_space<vmem>>, %arg1: memref<32x256xf32, #tpu.memory_space<vmem>>, %arg2: memref<1x256xf32, #tpu.memory_space<vmem>>, %arg3: memref<64x256xf32, #tpu.memory_space<vmem>>, %arg4: memref<32x128xf32, #tpu.memory_space<vmem>>, %arg5: memref<32x128xf32, #tpu.memory_space<vmem>>, %arg6: memref<1x128xf32, #tpu.memory_space<vmem>>, %arg7: memref<64x128xf32, #tpu.memory_space<vmem>>, %arg8: memref<64x256xf32, #tpu.memory_space<vmem>>, %arg9: memref<64x32xf32, #tpu.memory_space<vmem>>, %arg10: memref<64x32xf32, #tpu.memory_space<vmem>>) attributes {dimension_semantics = [], scalar_prefetch = 0 : i64, scratch_operands = 3 : i64, tpu.core_type = #tpu.core_type<tc>} {
    %c0 = arith.constant 0 : index
    %c0_0 = arith.constant 0 : index
    %0 = vector.load %arg0[%c0, %c0_0] : memref<64x32xf32, #tpu.memory_space<vmem>>, vector<64x32xf32>
    %c0_1 = arith.constant 0 : index
    %c0_2 = arith.constant 0 : index
    %1 = vector.load %arg1[%c0_1, %c0_2] : memref<32x256xf32, #tpu.memory_space<vmem>>, vector<32x256xf32>
    %cst = arith.constant dense<0.000000e+00> : vector<64x256xf32>
    %2 = tpu.matmul %0, %1, %cst {dimension_numbers = #tpu.dot_dimension_numbers<[1], [0], [0], [1], [0, 0, 1, 1], [], []>} : vector<64x32xf32>, vector<32x256xf32>, vector<64x256xf32> -> vector<64x256xf32>
    %c0_3 = arith.constant 0 : index
    %c0_4 = arith.constant 0 : index
    %3 = vector.load %arg2[%c0_3, %c0_4] : memref<1x256xf32, #tpu.memory_space<vmem>>, vector<1x256xf32>
    %4 = vector.broadcast %3 : vector<1x256xf32> to vector<64x256xf32>
    %5 = arith.addf %2, %4 : vector<64x256xf32>
    %c0_5 = arith.constant 0 : index
    %c0_6 = arith.constant 0 : index
    %6 = vector.load %arg8[%c0_5, %c0_6] : memref<64x256xf32, #tpu.memory_space<vmem>>, vector<64x256xf32>
    tpu.vector_store %arg8[%c0_5, %c0_6], %5 {strides = array<i32>} : memref<64x256xf32, #tpu.memory_space<vmem>>, vector<64x256xf32>,
    %c0_7 = arith.constant 0 : index
    %c0_8 = arith.constant 0 : index
    %7 = vector.load %arg3[%c0_7, %c0_8] : memref<64x256xf32, #tpu.memory_space<vmem>>, vector<64x256xf32>
    %8 = tpu.iota {dimensions = array<i32: 1>} : vector<8x256xi32>
    %c192_i32 = arith.constant 192 : i32
    %9 = vector.broadcast %c192_i32 : i32 to vector<8x256xi32>
    %10 = arith.cmpi slt, %8, %9 : vector<8x256xi32>
    %cst_9 = arith.constant 0.000000e+00 : f32
    %11 = vector.broadcast %cst_9 : f32 to vector<8x64xf32>
    %c0_i32 = arith.constant 0 : i32
    %c8_i32 = arith.constant 8 : i32
    %12 = arith.muli %c0_i32, %c8_i32 : i32
    %13 = tpu.assume_multiple %12, 8 : i32
    %c7_i32 = arith.constant 7 : i32
    %14 = arith.subi %c7_i32, %c0_i32 : i32
    %c8_i32_10 = arith.constant 8 : i32
    %15 = arith.muli %14, %c8_i32_10 : i32
    %16 = tpu.assume_multiple %15, 8 : i32
    %17 = arith.index_cast %13 : i32 to index
    %c0_11 = arith.constant 0 : index
    %18 = vector.load %arg8[%17, %c0_11] : memref<64x256xf32, #tpu.memory_space<vmem>>, vector<8x256xf32>
    %cst_12 = arith.constant dense<0.000000e+00> : vector<8x256xf32>
    %19 = tpu.matmul %11, %7, %cst_12 {dimension_numbers = #tpu.dot_dimension_numbers<[1], [0], [0], [1], [0, 0, 1, 1], [], []>} : vector<8x64xf32>, vector<64x256xf32>, vector<8x256xf32> -> vector<8x256xf32>
    %20 = arith.addf %19, %18 : vector<8x256xf32>
    %21 = arith.negf %20 : vector<8x256xf32>
    %22 = math.exp %21 : vector<8x256xf32>
    %cst_13 = arith.constant 1.000000e+00 : f32
    %23 = vector.broadcast %cst_13 : f32 to vector<8x256xf32>
    %24 = arith.addf %23, %22 : vector<8x256xf32>
    %25 = arith.divf %23, %24 : vector<8x256xf32>
    %26 = math.tanh %20 : vector<8x256xf32>
    %27 = arith.select %10, %25, %26 : vector<8x256xi1>, vector<8x256xf32>
    %28 = vector.extract_strided_slice %27 {offsets = [0, 0], sizes = [8, 64], strides = [1, 1]} : vector<8x256xf32> to vector<8x64xf32>
    %29 = vector.extract_strided_slice %27 {offsets = [0, 64], sizes = [8, 64], strides = [1, 1]} : vector<8x256xf32> to vector<8x64xf32>
    %30 = vector.extract_strided_slice %27 {offsets = [0, 128], sizes = [8, 64], strides = [1, 1]} : vector<8x256xf32> to vector<8x64xf32>
    %31 = vector.extract_strided_slice %27 {offsets = [0, 192], sizes = [8, 64], strides = [1, 1]} : vector<8x256xf32> to vector<8x64xf32>
    %32 = arith.mulf %29, %11 : vector<8x64xf32>
    %33 = arith.mulf %28, %31 : vector<8x64xf32>
    %34 = arith.addf %32, %33 : vector<8x64xf32>
    %35 = math.tanh %34 : vector<8x64xf32>
    %36 = arith.mulf %30, %35 : vector<8x64xf32>
    %37 = vector.extract_strided_slice %36 {offsets = [0, 0], sizes = [8, 32], strides = [1, 1]} : vector<8x64xf32> to vector<8x32xf32>
    %38 = arith.index_cast %13 : i32 to index
    %c0_14 = arith.constant 0 : index
    %39 = vector.load %arg9[%38, %c0_14] : memref<64x32xf32, #tpu.memory_space<vmem>>, vector<8x32xf32>
    tpu.vector_store %arg9[%38, %c0_14], %37 {strides = array<i32>} : memref<64x32xf32, #tpu.memory_space<vmem>>, vector<8x32xf32>,
    %40 = vector.extract_strided_slice %36 {offsets = [0, 32], sizes = [8, 32], strides = [1, 1]} : vector<8x64xf32> to vector<8x32xf32>
    %41 = arith.index_cast %16 : i32 to index
    %c0_15 = arith.constant 0 : index
    %42 = vector.load %arg10[%41, %c0_15] : memref<64x32xf32, #tpu.memory_space<vmem>>, vector<8x32xf32>
    tpu.vector_store %arg10[%41, %c0_15], %40 {strides = array<i32>} : memref<64x32xf32, #tpu.memory_space<vmem>>, vector<8x32xf32>,
    %c1_i32 = arith.constant 1 : i32
    %c8_i32_16 = arith.constant 8 : i32
    %43 = arith.muli %c1_i32, %c8_i32_16 : i32
    %44 = tpu.assume_multiple %43, 8 : i32
    %c7_i32_17 = arith.constant 7 : i32
    %45 = arith.subi %c7_i32_17, %c1_i32 : i32
    %c8_i32_18 = arith.constant 8 : i32
    %46 = arith.muli %45, %c8_i32_18 : i32
    %47 = tpu.assume_multiple %46, 8 : i32
    %48 = arith.index_cast %44 : i32 to index
    %c0_19 = arith.constant 0 : index
    %49 = vector.load %arg8[%48, %c0_19] : memref<64x256xf32, #tpu.memory_space<vmem>>, vector<8x256xf32>
    %cst_20 = arith.constant dense<0.000000e+00> : vector<8x256xf32>
    %50 = tpu.matmul %36, %7, %cst_20 {dimension_numbers = #tpu.dot_dimension_numbers<[1], [0], [0], [1], [0, 0, 1, 1], [], []>} : vector<8x64xf32>, vector<64x256xf32>, vector<8x256xf32> -> vector<8x256xf32>
    %51 = arith.addf %50, %49 : vector<8x256xf32>
    %52 = arith.negf %51 : vector<8x256xf32>
    %53 = math.exp %52 : vector<8x256xf32>
    %cst_21 = arith.constant 1.000000e+00 : f32
    %54 = vector.broadcast %cst_21 : f32 to vector<8x256xf32>
    %55 = arith.addf %54, %53 : vector<8x256xf32>
    %56 = arith.divf %54, %55 : vector<8x256xf32>
    %57 = math.tanh %51 : vector<8x256xf32>
    %58 = arith.select %10, %56, %57 : vector<8x256xi1>, vector<8x256xf32>
    %59 = vector.extract_strided_slice %58 {offsets = [0, 0], sizes = [8, 64], strides = [1, 1]} : vector<8x256xf32> to vector<8x64xf32>
    %60 = vector.extract_strided_slice %58 {offsets = [0, 64], sizes = [8, 64], strides = [1, 1]} : vector<8x256xf32> to vector<8x64xf32>
    %61 = vector.extract_strided_slice %58 {offsets = [0, 128], sizes = [8, 64], strides = [1, 1]} : vector<8x256xf32> to vector<8x64xf32>
    %62 = vector.extract_strided_slice %58 {offsets = [0, 192], sizes = [8, 64], strides = [1, 1]} : vector<8x256xf32> to vector<8x64xf32>
    %63 = arith.mulf %60, %34 : vector<8x64xf32>
    %64 = arith.mulf %59, %62 : vector<8x64xf32>
    %65 = arith.addf %63, %64 : vector<8x64xf32>
    %66 = math.tanh %65 : vector<8x64xf32>
    %67 = arith.mulf %61, %66 : vector<8x64xf32>
    %68 = vector.extract_strided_slice %67 {offsets = [0, 0], sizes = [8, 32], strides = [1, 1]} : vector<8x64xf32> to vector<8x32xf32>
    %69 = arith.index_cast %44 : i32 to index
    %c0_22 = arith.constant 0 : index
    %70 = vector.load %arg9[%69, %c0_22] : memref<64x32xf32, #tpu.memory_space<vmem>>, vector<8x32xf32>
    tpu.vector_store %arg9[%69, %c0_22], %68 {strides = array<i32>} : memref<64x32xf32, #tpu.memory_space<vmem>>, vector<8x32xf32>,
    %71 = vector.extract_strided_slice %67 {offsets = [0, 32], sizes = [8, 32], strides = [1, 1]} : vector<8x64xf32> to vector<8x32xf32>
    %72 = arith.index_cast %47 : i32 to index
    %c0_23 = arith.constant 0 : index
    %73 = vector.load %arg10[%72, %c0_23] : memref<64x32xf32, #tpu.memory_space<vmem>>, vector<8x32xf32>
    tpu.vector_store %arg10[%72, %c0_23], %71 {strides = array<i32>} : memref<64x32xf32, #tpu.memory_space<vmem>>, vector<8x32xf32>,
    %c2_i32 = arith.constant 2 : i32
    %c8_i32_24 = arith.constant 8 : i32
    %74 = arith.muli %c2_i32, %c8_i32_24 : i32
    %75 = tpu.assume_multiple %74, 8 : i32
    %c7_i32_25 = arith.constant 7 : i32
    %76 = arith.subi %c7_i32_25, %c2_i32 : i32
    %c8_i32_26 = arith.constant 8 : i32
    %77 = arith.muli %76, %c8_i32_26 : i32
    %78 = tpu.assume_multiple %77, 8 : i32
    %79 = arith.index_cast %75 : i32 to index
    %c0_27 = arith.constant 0 : index
    %80 = vector.load %arg8[%79, %c0_27] : memref<64x256xf32, #tpu.memory_space<vmem>>, vector<8x256xf32>
    %cst_28 = arith.constant dense<0.000000e+00> : vector<8x256xf32>
    %81 = tpu.matmul %67, %7, %cst_28 {dimension_numbers = #tpu.dot_dimension_numbers<[1], [0], [0], [1], [0, 0, 1, 1], [], []>} : vector<8x64xf32>, vector<64x256xf32>, vector<8x256xf32> -> vector<8x256xf32>
    %82 = arith.addf %81, %80 : vector<8x256xf32>
    %83 = arith.negf %82 : vector<8x256xf32>
    %84 = math.exp %83 : vector<8x256xf32>
    %cst_29 = arith.constant 1.000000e+00 : f32
    %85 = vector.broadcast %cst_29 : f32 to vector<8x256xf32>
    %86 = arith.addf %85, %84 : vector<8x256xf32>
    %87 = arith.divf %85, %86 : vector<8x256xf32>
    %88 = math.tanh %82 : vector<8x256xf32>
    %89 = arith.select %10, %87, %88 : vector<8x256xi1>, vector<8x256xf32>
    %90 = vector.extract_strided_slice %89 {offsets = [0, 0], sizes = [8, 64], strides = [1, 1]} : vector<8x256xf32> to vector<8x64xf32>
    %91 = vector.extract_strided_slice %89 {offsets = [0, 64], sizes = [8, 64], strides = [1, 1]} : vector<8x256xf32> to vector<8x64xf32>
    %92 = vector.extract_strided_slice %89 {offsets = [0, 128], sizes = [8, 64], strides = [1, 1]} : vector<8x256xf32> to vector<8x64xf32>
    %93 = vector.extract_strided_slice %89 {offsets = [0, 192], sizes = [8, 64], strides = [1, 1]} : vector<8x256xf32> to vector<8x64xf32>
    %94 = arith.mulf %91, %65 : vector<8x64xf32>
    %95 = arith.mulf %90, %93 : vector<8x64xf32>
    %96 = arith.addf %94, %95 : vector<8x64xf32>
    %97 = math.tanh %96 : vector<8x64xf32>
    %98 = arith.mulf %92, %97 : vector<8x64xf32>
    %99 = vector.extract_strided_slice %98 {offsets = [0, 0], sizes = [8, 32], strides = [1, 1]} : vector<8x64xf32> to vector<8x32xf32>
    %100 = arith.index_cast %75 : i32 to index
    %c0_30 = arith.constant 0 : index
    %101 = vector.load %arg9[%100, %c0_30] : memref<64x32xf32, #tpu.memory_space<vmem>>, vector<8x32xf32>
    tpu.vector_store %arg9[%100, %c0_30], %99 {strides = array<i32>} : memref<64x32xf32, #tpu.memory_space<vmem>>, vector<8x32xf32>,
    %102 = vector.extract_strided_slice %98 {offsets = [0, 32], sizes = [8, 32], strides = [1, 1]} : vector<8x64xf32> to vector<8x32xf32>
    %103 = arith.index_cast %78 : i32 to index
    %c0_31 = arith.constant 0 : index
    %104 = vector.load %arg10[%103, %c0_31] : memref<64x32xf32, #tpu.memory_space<vmem>>, vector<8x32xf32>
    tpu.vector_store %arg10[%103, %c0_31], %102 {strides = array<i32>} : memref<64x32xf32, #tpu.memory_space<vmem>>, vector<8x32xf32>,
    %c3_i32 = arith.constant 3 : i32
    %c8_i32_32 = arith.constant 8 : i32
    %105 = arith.muli %c3_i32, %c8_i32_32 : i32
    %106 = tpu.assume_multiple %105, 8 : i32
    %c7_i32_33 = arith.constant 7 : i32
    %107 = arith.subi %c7_i32_33, %c3_i32 : i32
    %c8_i32_34 = arith.constant 8 : i32
    %108 = arith.muli %107, %c8_i32_34 : i32
    %109 = tpu.assume_multiple %108, 8 : i32
    %110 = arith.index_cast %106 : i32 to index
    %c0_35 = arith.constant 0 : index
    %111 = vector.load %arg8[%110, %c0_35] : memref<64x256xf32, #tpu.memory_space<vmem>>, vector<8x256xf32>
    %cst_36 = arith.constant dense<0.000000e+00> : vector<8x256xf32>
    %112 = tpu.matmul %98, %7, %cst_36 {dimension_numbers = #tpu.dot_dimension_numbers<[1], [0], [0], [1], [0, 0, 1, 1], [], []>} : vector<8x64xf32>, vector<64x256xf32>, vector<8x256xf32> -> vector<8x256xf32>
    %113 = arith.addf %112, %111 : vector<8x256xf32>
    %114 = arith.negf %113 : vector<8x256xf32>
    %115 = math.exp %114 : vector<8x256xf32>
    %cst_37 = arith.constant 1.000000e+00 : f32
    %116 = vector.broadcast %cst_37 : f32 to vector<8x256xf32>
    %117 = arith.addf %116, %115 : vector<8x256xf32>
    %118 = arith.divf %116, %117 : vector<8x256xf32>
    %119 = math.tanh %113 : vector<8x256xf32>
    %120 = arith.select %10, %118, %119 : vector<8x256xi1>, vector<8x256xf32>
    %121 = vector.extract_strided_slice %120 {offsets = [0, 0], sizes = [8, 64], strides = [1, 1]} : vector<8x256xf32> to vector<8x64xf32>
    %122 = vector.extract_strided_slice %120 {offsets = [0, 64], sizes = [8, 64], strides = [1, 1]} : vector<8x256xf32> to vector<8x64xf32>
    %123 = vector.extract_strided_slice %120 {offsets = [0, 128], sizes = [8, 64], strides = [1, 1]} : vector<8x256xf32> to vector<8x64xf32>
    %124 = vector.extract_strided_slice %120 {offsets = [0, 192], sizes = [8, 64], strides = [1, 1]} : vector<8x256xf32> to vector<8x64xf32>
    %125 = arith.mulf %122, %96 : vector<8x64xf32>
    %126 = arith.mulf %121, %124 : vector<8x64xf32>
    %127 = arith.addf %125, %126 : vector<8x64xf32>
    %128 = math.tanh %127 : vector<8x64xf32>
    %129 = arith.mulf %123, %128 : vector<8x64xf32>
    %130 = vector.extract_strided_slice %129 {offsets = [0, 0], sizes = [8, 32], strides = [1, 1]} : vector<8x64xf32> to vector<8x32xf32>
    %131 = arith.index_cast %106 : i32 to index
    %c0_38 = arith.constant 0 : index
    %132 = vector.load %arg9[%131, %c0_38] : memref<64x32xf32, #tpu.memory_space<vmem>>, vector<8x32xf32>
    tpu.vector_store %arg9[%131, %c0_38], %130 {strides = array<i32>} : memref<64x32xf32, #tpu.memory_space<vmem>>, vector<8x32xf32>,
    %133 = vector.extract_strided_slice %129 {offsets = [0, 32], sizes = [8, 32], strides = [1, 1]} : vector<8x64xf32> to vector<8x32xf32>
    %134 = arith.index_cast %109 : i32 to index
    %c0_39 = arith.constant 0 : index
    %135 = vector.load %arg10[%134, %c0_39] : memref<64x32xf32, #tpu.memory_space<vmem>>, vector<8x32xf32>
    tpu.vector_store %arg10[%134, %c0_39], %133 {strides = array<i32>} : memref<64x32xf32, #tpu.memory_space<vmem>>, vector<8x32xf32>,
    %c4_i32 = arith.constant 4 : i32
    %c8_i32_40 = arith.constant 8 : i32
    %136 = arith.muli %c4_i32, %c8_i32_40 : i32
    %137 = tpu.assume_multiple %136, 8 : i32
    %c7_i32_41 = arith.constant 7 : i32
    %138 = arith.subi %c7_i32_41, %c4_i32 : i32
    %c8_i32_42 = arith.constant 8 : i32
    %139 = arith.muli %138, %c8_i32_42 : i32
    %140 = tpu.assume_multiple %139, 8 : i32
    %141 = arith.index_cast %137 : i32 to index
    %c0_43 = arith.constant 0 : index
    %142 = vector.load %arg8[%141, %c0_43] : memref<64x256xf32, #tpu.memory_space<vmem>>, vector<8x256xf32>
    %cst_44 = arith.constant dense<0.000000e+00> : vector<8x256xf32>
    %143 = tpu.matmul %129, %7, %cst_44 {dimension_numbers = #tpu.dot_dimension_numbers<[1], [0], [0], [1], [0, 0, 1, 1], [], []>} : vector<8x64xf32>, vector<64x256xf32>, vector<8x256xf32> -> vector<8x256xf32>
    %144 = arith.addf %143, %142 : vector<8x256xf32>
    %145 = arith.negf %144 : vector<8x256xf32>
    %146 = math.exp %145 : vector<8x256xf32>
    %cst_45 = arith.constant 1.000000e+00 : f32
    %147 = vector.broadcast %cst_45 : f32 to vector<8x256xf32>
    %148 = arith.addf %147, %146 : vector<8x256xf32>
    %149 = arith.divf %147, %148 : vector<8x256xf32>
    %150 = math.tanh %144 : vector<8x256xf32>
    %151 = arith.select %10, %149, %150 : vector<8x256xi1>, vector<8x256xf32>
    %152 = vector.extract_strided_slice %151 {offsets = [0, 0], sizes = [8, 64], strides = [1, 1]} : vector<8x256xf32> to vector<8x64xf32>
    %153 = vector.extract_strided_slice %151 {offsets = [0, 64], sizes = [8, 64], strides = [1, 1]} : vector<8x256xf32> to vector<8x64xf32>
    %154 = vector.extract_strided_slice %151 {offsets = [0, 128], sizes = [8, 64], strides = [1, 1]} : vector<8x256xf32> to vector<8x64xf32>
    %155 = vector.extract_strided_slice %151 {offsets = [0, 192], sizes = [8, 64], strides = [1, 1]} : vector<8x256xf32> to vector<8x64xf32>
    %156 = arith.mulf %153, %127 : vector<8x64xf32>
    %157 = arith.mulf %152, %155 : vector<8x64xf32>
    %158 = arith.addf %156, %157 : vector<8x64xf32>
    %159 = math.tanh %158 : vector<8x64xf32>
    %160 = arith.mulf %154, %159 : vector<8x64xf32>
    %161 = vector.extract_strided_slice %160 {offsets = [0, 0], sizes = [8, 32], strides = [1, 1]} : vector<8x64xf32> to vector<8x32xf32>
    %162 = arith.index_cast %137 : i32 to index
    %c0_46 = arith.constant 0 : index
    %163 = vector.load %arg9[%162, %c0_46] : memref<64x32xf32, #tpu.memory_space<vmem>>, vector<8x32xf32>
    tpu.vector_store %arg9[%162, %c0_46], %161 {strides = array<i32>} : memref<64x32xf32, #tpu.memory_space<vmem>>, vector<8x32xf32>,
    %164 = vector.extract_strided_slice %160 {offsets = [0, 32], sizes = [8, 32], strides = [1, 1]} : vector<8x64xf32> to vector<8x32xf32>
    %165 = arith.index_cast %140 : i32 to index
    %c0_47 = arith.constant 0 : index
    %166 = vector.load %arg10[%165, %c0_47] : memref<64x32xf32, #tpu.memory_space<vmem>>, vector<8x32xf32>
    tpu.vector_store %arg10[%165, %c0_47], %164 {strides = array<i32>} : memref<64x32xf32, #tpu.memory_space<vmem>>, vector<8x32xf32>,
    %c5_i32 = arith.constant 5 : i32
    %c8_i32_48 = arith.constant 8 : i32
    %167 = arith.muli %c5_i32, %c8_i32_48 : i32
    %168 = tpu.assume_multiple %167, 8 : i32
    %c7_i32_49 = arith.constant 7 : i32
    %169 = arith.subi %c7_i32_49, %c5_i32 : i32
    %c8_i32_50 = arith.constant 8 : i32
    %170 = arith.muli %169, %c8_i32_50 : i32
    %171 = tpu.assume_multiple %170, 8 : i32
    %172 = arith.index_cast %168 : i32 to index
    %c0_51 = arith.constant 0 : index
    %173 = vector.load %arg8[%172, %c0_51] : memref<64x256xf32, #tpu.memory_space<vmem>>, vector<8x256xf32>
    %cst_52 = arith.constant dense<0.000000e+00> : vector<8x256xf32>
    %174 = tpu.matmul %160, %7, %cst_52 {dimension_numbers = #tpu.dot_dimension_numbers<[1], [0], [0], [1], [0, 0, 1, 1], [], []>} : vector<8x64xf32>, vector<64x256xf32>, vector<8x256xf32> -> vector<8x256xf32>
    %175 = arith.addf %174, %173 : vector<8x256xf32>
    %176 = arith.negf %175 : vector<8x256xf32>
    %177 = math.exp %176 : vector<8x256xf32>
    %cst_53 = arith.constant 1.000000e+00 : f32
    %178 = vector.broadcast %cst_53 : f32 to vector<8x256xf32>
    %179 = arith.addf %178, %177 : vector<8x256xf32>
    %180 = arith.divf %178, %179 : vector<8x256xf32>
    %181 = math.tanh %175 : vector<8x256xf32>
    %182 = arith.select %10, %180, %181 : vector<8x256xi1>, vector<8x256xf32>
    %183 = vector.extract_strided_slice %182 {offsets = [0, 0], sizes = [8, 64], strides = [1, 1]} : vector<8x256xf32> to vector<8x64xf32>
    %184 = vector.extract_strided_slice %182 {offsets = [0, 64], sizes = [8, 64], strides = [1, 1]} : vector<8x256xf32> to vector<8x64xf32>
    %185 = vector.extract_strided_slice %182 {offsets = [0, 128], sizes = [8, 64], strides = [1, 1]} : vector<8x256xf32> to vector<8x64xf32>
    %186 = vector.extract_strided_slice %182 {offsets = [0, 192], sizes = [8, 64], strides = [1, 1]} : vector<8x256xf32> to vector<8x64xf32>
    %187 = arith.mulf %184, %158 : vector<8x64xf32>
    %188 = arith.mulf %183, %186 : vector<8x64xf32>
    %189 = arith.addf %187, %188 : vector<8x64xf32>
    %190 = math.tanh %189 : vector<8x64xf32>
    %191 = arith.mulf %185, %190 : vector<8x64xf32>
    %192 = vector.extract_strided_slice %191 {offsets = [0, 0], sizes = [8, 32], strides = [1, 1]} : vector<8x64xf32> to vector<8x32xf32>
    %193 = arith.index_cast %168 : i32 to index
    %c0_54 = arith.constant 0 : index
    %194 = vector.load %arg9[%193, %c0_54] : memref<64x32xf32, #tpu.memory_space<vmem>>, vector<8x32xf32>
    tpu.vector_store %arg9[%193, %c0_54], %192 {strides = array<i32>} : memref<64x32xf32, #tpu.memory_space<vmem>>, vector<8x32xf32>,
    %195 = vector.extract_strided_slice %191 {offsets = [0, 32], sizes = [8, 32], strides = [1, 1]} : vector<8x64xf32> to vector<8x32xf32>
    %196 = arith.index_cast %171 : i32 to index
    %c0_55 = arith.constant 0 : index
    %197 = vector.load %arg10[%196, %c0_55] : memref<64x32xf32, #tpu.memory_space<vmem>>, vector<8x32xf32>
    tpu.vector_store %arg10[%196, %c0_55], %195 {strides = array<i32>} : memref<64x32xf32, #tpu.memory_space<vmem>>, vector<8x32xf32>,
    %c6_i32 = arith.constant 6 : i32
    %c8_i32_56 = arith.constant 8 : i32
    %198 = arith.muli %c6_i32, %c8_i32_56 : i32
    %199 = tpu.assume_multiple %198, 8 : i32
    %c7_i32_57 = arith.constant 7 : i32
    %200 = arith.subi %c7_i32_57, %c6_i32 : i32
    %c8_i32_58 = arith.constant 8 : i32
    %201 = arith.muli %200, %c8_i32_58 : i32
    %202 = tpu.assume_multiple %201, 8 : i32
    %203 = arith.index_cast %199 : i32 to index
    %c0_59 = arith.constant 0 : index
    %204 = vector.load %arg8[%203, %c0_59] : memref<64x256xf32, #tpu.memory_space<vmem>>, vector<8x256xf32>
    %cst_60 = arith.constant dense<0.000000e+00> : vector<8x256xf32>
    %205 = tpu.matmul %191, %7, %cst_60 {dimension_numbers = #tpu.dot_dimension_numbers<[1], [0], [0], [1], [0, 0, 1, 1], [], []>} : vector<8x64xf32>, vector<64x256xf32>, vector<8x256xf32> -> vector<8x256xf32>
    %206 = arith.addf %205, %204 : vector<8x256xf32>
    %207 = arith.negf %206 : vector<8x256xf32>
    %208 = math.exp %207 : vector<8x256xf32>
    %cst_61 = arith.constant 1.000000e+00 : f32
    %209 = vector.broadcast %cst_61 : f32 to vector<8x256xf32>
    %210 = arith.addf %209, %208 : vector<8x256xf32>
    %211 = arith.divf %209, %210 : vector<8x256xf32>
    %212 = math.tanh %206 : vector<8x256xf32>
    %213 = arith.select %10, %211, %212 : vector<8x256xi1>, vector<8x256xf32>
    %214 = vector.extract_strided_slice %213 {offsets = [0, 0], sizes = [8, 64], strides = [1, 1]} : vector<8x256xf32> to vector<8x64xf32>
    %215 = vector.extract_strided_slice %213 {offsets = [0, 64], sizes = [8, 64], strides = [1, 1]} : vector<8x256xf32> to vector<8x64xf32>
    %216 = vector.extract_strided_slice %213 {offsets = [0, 128], sizes = [8, 64], strides = [1, 1]} : vector<8x256xf32> to vector<8x64xf32>
    %217 = vector.extract_strided_slice %213 {offsets = [0, 192], sizes = [8, 64], strides = [1, 1]} : vector<8x256xf32> to vector<8x64xf32>
    %218 = arith.mulf %215, %189 : vector<8x64xf32>
    %219 = arith.mulf %214, %217 : vector<8x64xf32>
    %220 = arith.addf %218, %219 : vector<8x64xf32>
    %221 = math.tanh %220 : vector<8x64xf32>
    %222 = arith.mulf %216, %221 : vector<8x64xf32>
    %223 = vector.extract_strided_slice %222 {offsets = [0, 0], sizes = [8, 32], strides = [1, 1]} : vector<8x64xf32> to vector<8x32xf32>
    %224 = arith.index_cast %199 : i32 to index
    %c0_62 = arith.constant 0 : index
    %225 = vector.load %arg9[%224, %c0_62] : memref<64x32xf32, #tpu.memory_space<vmem>>, vector<8x32xf32>
    tpu.vector_store %arg9[%224, %c0_62], %223 {strides = array<i32>} : memref<64x32xf32, #tpu.memory_space<vmem>>, vector<8x32xf32>,
    %226 = vector.extract_strided_slice %222 {offsets = [0, 32], sizes = [8, 32], strides = [1, 1]} : vector<8x64xf32> to vector<8x32xf32>
    %227 = arith.index_cast %202 : i32 to index
    %c0_63 = arith.constant 0 : index
    %228 = vector.load %arg10[%227, %c0_63] : memref<64x32xf32, #tpu.memory_space<vmem>>, vector<8x32xf32>
    tpu.vector_store %arg10[%227, %c0_63], %226 {strides = array<i32>} : memref<64x32xf32, #tpu.memory_space<vmem>>, vector<8x32xf32>,
    %c7_i32_64 = arith.constant 7 : i32
    %c8_i32_65 = arith.constant 8 : i32
    %229 = arith.muli %c7_i32_64, %c8_i32_65 : i32
    %230 = tpu.assume_multiple %229, 8 : i32
    %c7_i32_66 = arith.constant 7 : i32
    %231 = arith.subi %c7_i32_66, %c7_i32_64 : i32
    %c8_i32_67 = arith.constant 8 : i32
    %232 = arith.muli %231, %c8_i32_67 : i32
    %233 = tpu.assume_multiple %232, 8 : i32
    %234 = arith.index_cast %230 : i32 to index
    %c0_68 = arith.constant 0 : index
    %235 = vector.load %arg8[%234, %c0_68] : memref<64x256xf32, #tpu.memory_space<vmem>>, vector<8x256xf32>
    %cst_69 = arith.constant dense<0.000000e+00> : vector<8x256xf32>
    %236 = tpu.matmul %222, %7, %cst_69 {dimension_numbers = #tpu.dot_dimension_numbers<[1], [0], [0], [1], [0, 0, 1, 1], [], []>} : vector<8x64xf32>, vector<64x256xf32>, vector<8x256xf32> -> vector<8x256xf32>
    %237 = arith.addf %236, %235 : vector<8x256xf32>
    %238 = arith.negf %237 : vector<8x256xf32>
    %239 = math.exp %238 : vector<8x256xf32>
    %cst_70 = arith.constant 1.000000e+00 : f32
    %240 = vector.broadcast %cst_70 : f32 to vector<8x256xf32>
    %241 = arith.addf %240, %239 : vector<8x256xf32>
    %242 = arith.divf %240, %241 : vector<8x256xf32>
    %243 = math.tanh %237 : vector<8x256xf32>
    %244 = arith.select %10, %242, %243 : vector<8x256xi1>, vector<8x256xf32>
    %245 = vector.extract_strided_slice %244 {offsets = [0, 0], sizes = [8, 64], strides = [1, 1]} : vector<8x256xf32> to vector<8x64xf32>
    %246 = vector.extract_strided_slice %244 {offsets = [0, 64], sizes = [8, 64], strides = [1, 1]} : vector<8x256xf32> to vector<8x64xf32>
    %247 = vector.extract_strided_slice %244 {offsets = [0, 128], sizes = [8, 64], strides = [1, 1]} : vector<8x256xf32> to vector<8x64xf32>
    %248 = vector.extract_strided_slice %244 {offsets = [0, 192], sizes = [8, 64], strides = [1, 1]} : vector<8x256xf32> to vector<8x64xf32>
    %249 = arith.mulf %246, %220 : vector<8x64xf32>
    %250 = arith.mulf %245, %248 : vector<8x64xf32>
    %251 = arith.addf %249, %250 : vector<8x64xf32>
    %252 = math.tanh %251 : vector<8x64xf32>
    %253 = arith.mulf %247, %252 : vector<8x64xf32>
    %254 = vector.extract_strided_slice %253 {offsets = [0, 0], sizes = [8, 32], strides = [1, 1]} : vector<8x64xf32> to vector<8x32xf32>
    %255 = arith.index_cast %230 : i32 to index
    %c0_71 = arith.constant 0 : index
    %256 = vector.load %arg9[%255, %c0_71] : memref<64x32xf32, #tpu.memory_space<vmem>>, vector<8x32xf32>
    tpu.vector_store %arg9[%255, %c0_71], %254 {strides = array<i32>} : memref<64x32xf32, #tpu.memory_space<vmem>>, vector<8x32xf32>,
    %257 = vector.extract_strided_slice %253 {offsets = [0, 32], sizes = [8, 32], strides = [1, 1]} : vector<8x64xf32> to vector<8x32xf32>
    %258 = arith.index_cast %233 : i32 to index
    %c0_72 = arith.constant 0 : index
    %259 = vector.load %arg10[%258, %c0_72] : memref<64x32xf32, #tpu.memory_space<vmem>>, vector<8x32xf32>
    tpu.vector_store %arg10[%258, %c0_72], %257 {strides = array<i32>} : memref<64x32xf32, #tpu.memory_space<vmem>>, vector<8x32xf32>,
    %c8_i32_73 = arith.constant 8 : i32
    %c0_74 = arith.constant 0 : index
    %c0_75 = arith.constant 0 : index
    %260 = vector.load %arg9[%c0_74, %c0_75] : memref<64x32xf32, #tpu.memory_space<vmem>>, vector<64x32xf32>
    %c0_76 = arith.constant 0 : index
    %c0_77 = arith.constant 0 : index
    %261 = vector.load %arg4[%c0_76, %c0_77] : memref<32x128xf32, #tpu.memory_space<vmem>>, vector<32x128xf32>
    %cst_78 = arith.constant dense<0.000000e+00> : vector<64x128xf32>
    %262 = tpu.matmul %260, %261, %cst_78 {dimension_numbers = #tpu.dot_dimension_numbers<[1], [0], [0], [1], [0, 0, 1, 1], [], []>} : vector<64x32xf32>, vector<32x128xf32>, vector<64x128xf32> -> vector<64x128xf32>
    %c0_79 = arith.constant 0 : index
    %c0_80 = arith.constant 0 : index
    %263 = vector.load %arg10[%c0_79, %c0_80] : memref<64x32xf32, #tpu.memory_space<vmem>>, vector<64x32xf32>
    %c0_81 = arith.constant 0 : index
    %c0_82 = arith.constant 0 : index
    %264 = vector.load %arg5[%c0_81, %c0_82] : memref<32x128xf32, #tpu.memory_space<vmem>>, vector<32x128xf32>
    %cst_83 = arith.constant dense<0.000000e+00> : vector<64x128xf32>
    %265 = tpu.matmul %263, %264, %cst_83 {dimension_numbers = #tpu.dot_dimension_numbers<[1], [0], [0], [1], [0, 0, 1, 1], [], []>} : vector<64x32xf32>, vector<32x128xf32>, vector<64x128xf32> -> vector<64x128xf32>
    %266 = arith.addf %262, %265 : vector<64x128xf32>
    %c0_84 = arith.constant 0 : index
    %c0_85 = arith.constant 0 : index
    %267 = vector.load %arg6[%c0_84, %c0_85] : memref<1x128xf32, #tpu.memory_space<vmem>>, vector<1x128xf32>
    %268 = vector.broadcast %267 : vector<1x128xf32> to vector<64x128xf32>
    %269 = arith.addf %266, %268 : vector<64x128xf32>
    %c0_86 = arith.constant 0 : index
    %c0_87 = arith.constant 0 : index
    %270 = vector.load %arg7[%c0_86, %c0_87] : memref<64x128xf32, #tpu.memory_space<vmem>>, vector<64x128xf32>
    tpu.vector_store %arg7[%c0_86, %c0_87], %269 {strides = array<i32>} : memref<64x128xf32, #tpu.memory_space<vmem>>, vector<64x128xf32>,
    return
  }
}

</mosaic_0001>

<llo_original>
// kernel: tpu_custom_call.1
$region0: #{tpu_custom_call.1}
  #allocation0 [shape = 'u32[]', space=smem, size = 0x4, offset = 0x4, fixed_abs, tag = 'smem constant byte address 0x4 - core index']
  #allocation1 [shape = 'u32[72,128]{1,0:T(1,128)}', space=vmem, size = 0x9000, scoped, tag = 'internal scratch']
  #allocation2 [shape = 'f32[64,256]{1,0:T(8,128)}', space=vmem, size = 0x10000, scoped, tag = 'scratch operand']
  #allocation3 [shape = 'f32[64,32]{1,0:T(8,128)}', space=vmem, size = 0x8000, scoped, tag = 'scratch operand']
  #allocation4 [shape = 'f32[64,32]{1,0:T(8,128)}', space=vmem, size = 0x8000, scoped, tag = 'scratch operand']
  %s0 = inlined_call_operand.vmem [shape: f32[64,32], index: 0, kind: input, shape index: {}]
  %s1 = inlined_call_operand.vmem [shape: f32[32,256], index: 1, kind: input, shape index: {}]
  %s2 = inlined_call_operand.hbm [shape: f32[1,256], index: 2, kind: input, shape index: {}]
  %s3 = inlined_call_operand.hbm [shape: f32[64,256], index: 3, kind: input, shape index: {}]
  %s4 = inlined_call_operand.vmem [shape: f32[32,128], index: 4, kind: input, shape index: {}]
  %s5 = inlined_call_operand.hbm [shape: f32[32,128], index: 5, kind: input, shape index: {}]
  %s6 = inlined_call_operand.vmem [shape: f32[1,128], index: 6, kind: input, shape index: {}]
  %s7 = inlined_call_operand.hbm [shape: f32[64,128], index: 7, kind: output, shape index: {}]
  %s8 = sld [smem:[#allocation0]]
  $region50: #{tpu_custom_call.1} parent=0
    _
  %s10 = ssub.s32 1, %s8
  %s11 = scalar_select 0, %s10, %s8
  $region1: #{tpu_custom_call.1} parent=0
    #allocation5 [shape = 'u8[1024]{0}', space=vmem, size = 0x400, scoped, tag = 'input window, operand 2, single buffered']
    #allocation6 [shape = 's32[1]{0}', space=sflag, size = 0x4, scoped, tag = 'scoped memory for tpu_custom_call.1']
    #allocation7 [shape = 's32[1]{0}', space=sflag, size = 0x4, scoped, tag = 'scoped memory for tpu_custom_call.1']
    #allocation8 [shape = 'u8[65536]{0}', space=vmem, size = 0x10000, scoped, tag = 'input window, operand 3, single buffered']
    #allocation9 [shape = 's32[1]{0}', space=sflag, size = 0x4, scoped, tag = 'scoped memory for tpu_custom_call.1']
    #allocation10 [shape = 'u8[16384]{0}', space=vmem, size = 0x4000, scoped, tag = 'input window, operand 5, single buffered']
    #allocation11 [shape = 'u8[32768]{0}', space=vmem, size = 0x8000, scoped, tag = 'output window, operand 0, single buffered']
    %12 = vsyncpa [#allocation6], 0
    %13 = vsyncpa [#allocation9], 0
    %14 = vsyncpa [#allocation7], 0
    // Predicated region
    $region2: #{tpu_custom_call.1} parent=1 // pred_check
      _
    $region3: #{tpu_custom_call.1} parent=1 // pred_check_branch
      %16 = sbr.rel (0) target = $region5
    $region4: #{tpu_custom_call.1} parent=1 // pred_region
      _
    $region5: #{tpu_custom_call.1} parent=1 // pred_fallthru
      _
    // Predicated region
    $region6: #{tpu_custom_call.1} parent=1 // pred_check
      _
    $region7: #{tpu_custom_call.1} parent=1 // pred_check_branch
      %18 = sbr.rel (0) target = $region9
    $region8: #{tpu_custom_call.1} parent=1 // pred_region
      _
    $region9: #{tpu_custom_call.1} parent=1 // pred_fallthru
      _
    // Predicated region
    $region10: #{tpu_custom_call.1} parent=1 // pred_check
      _
    $region11: #{tpu_custom_call.1} parent=1 // pred_check_branch
      %20 = sbr.rel (0) target = $region13
    $region12: #{tpu_custom_call.1} parent=1 // pred_region
      %22 = vsyncadd [#allocation6], 0
      %s24 = sshll.u32 %s2, 4
      %s25 = int_to_ptr.hbm [resolvable:$true] %s24
      %s26 = sshll.u32 [#allocation5], 4
      %s27 = int_to_ptr.vmem [resolvable:$true] %s26
      %29 = dma.hbm_to_vmem [thread:$0]  %s25, 32, %s27, [#allocation6]
    $region13: #{tpu_custom_call.1} parent=1 // pred_fallthru
      _
    // Predicated region
    $region14: #{tpu_custom_call.1} parent=1 // pred_check
      _
    $region15: #{tpu_custom_call.1} parent=1 // pred_check_branch
      %31 = sbr.rel (0) target = $region17
    $region16: #{tpu_custom_call.1} parent=1 // pred_region
      %33 = vsyncadd [#allocation9], 0
      %s34 = sshll.u32 %s3, 4
      %s35 = int_to_ptr.hbm [resolvable:$true] %s34
      %s36 = sshll.u32 [#allocation8], 4
      %s37 = int_to_ptr.vmem [resolvable:$true] %s36
      %42 = dma.hbm_to_vmem [thread:$0]  %s35, 2048, %s37, [#allocation9], 256, 256, 16
    $region17: #{tpu_custom_call.1} parent=1 // pred_fallthru
      _
    // Predicated region
    $region18: #{tpu_custom_call.1} parent=1 // pred_check
      _
    $region19: #{tpu_custom_call.1} parent=1 // pred_check_branch
      %44 = sbr.rel (0) target = $region21
    $region20: #{tpu_custom_call.1} parent=1 // pred_region
      _
    $region21: #{tpu_custom_call.1} parent=1 // pred_fallthru
      _
    // Predicated region
    $region22: #{tpu_custom_call.1} parent=1 // pred_check
      _
    $region23: #{tpu_custom_call.1} parent=1 // pred_check_branch
      %46 = sbr.rel (0) target = $region25
    $region24: #{tpu_custom_call.1} parent=1 // pred_region
      %48 = vsyncadd [#allocation9], 0
      %s49 = sshll.u32 %s5, 4
      %s50 = int_to_ptr.hbm [resolvable:$true] %s49
      %s51 = sshll.u32 [#allocation10], 4
      %s52 = int_to_ptr.vmem [resolvable:$true] %s51
      %57 = dma.hbm_to_vmem [thread:$0]  %s50, 512, %s52, [#allocation9], 128, 128, 8
    $region25: #{tpu_custom_call.1} parent=1 // pred_fallthru
      _
    // Predicated region
    $region26: #{tpu_custom_call.1} parent=1 // pred_check
      _
    $region27: #{tpu_custom_call.1} parent=1 // pred_check_branch
      %59 = sbr.rel (0) target = $region29
    $region28: #{tpu_custom_call.1} parent=1 // pred_region
      _
    $region29: #{tpu_custom_call.1} parent=1 // pred_fallthru
      _
    // Predicated region
    $region30: #{tpu_custom_call.1} parent=1 // pred_check
      _
    $region31: #{tpu_custom_call.1} parent=1 // pred_check_branch
      %61 = sbr.rel (0) target = $region33
    $region32: #{tpu_custom_call.1} parent=1 // pred_region
      %63 = dma.done [#allocation6], 32
    $region33: #{tpu_custom_call.1} parent=1 // pred_fallthru
      _
    // Predicated region
    $region34: #{tpu_custom_call.1} parent=1 // pred_check
      _
    $region35: #{tpu_custom_call.1} parent=1 // pred_check_branch
      %65 = sbr.rel (0) target = $region37
    $region36: #{tpu_custom_call.1} parent=1 // pred_region
      %67 = dma.done [#allocation9], 2048
    $region37: #{tpu_custom_call.1} parent=1 // pred_fallthru
      _
    // Predicated region
    $region38: #{tpu_custom_call.1} parent=1 // pred_check
      _
    $region39: #{tpu_custom_call.1} parent=1 // pred_check_branch
      %69 = sbr.rel (0) target = $region41
    $region40: #{tpu_custom_call.1} parent=1 // pred_region
      %71 = dma.done [#allocation9], 512
    $region41: #{tpu_custom_call.1} parent=1 // pred_fallthru
      _
    %v72 = vld [vmem:[%s0] sm:$0xff]
    %v73 = vld [vmem:[%s0 + $0x8] sm:$0xff]
    %v74 = vld [vmem:[%s0 + $0x10] sm:$0xff]
    %v75 = vld [vmem:[%s0 + $0x18] sm:$0xff]
    %v76 = vld [vmem:[%s0 + $0x20] sm:$0xff]
    %v77 = vld [vmem:[%s0 + $0x28] sm:$0xff]
    %v78 = vld [vmem:[%s0 + $0x30] sm:$0xff]
    %v79 = vld [vmem:[%s0 + $0x38] sm:$0xff]
    %v80 = vld [vmem:[%s1] sm:$0xff]
    %v81 = vld [vmem:[%s1 + $0x8] sm:$0xff]
    %v82 = vld [vmem:[%s1 + $0x10] sm:$0xff]
    %v83 = vld [vmem:[%s1 + $0x18] sm:$0xff]
    %v84 = vld [vmem:[%s1 + $0x20] sm:$0xff]
    %v85 = vld [vmem:[%s1 + $0x28] sm:$0xff]
    %v86 = vld [vmem:[%s1 + $0x30] sm:$0xff]
    %v87 = vld [vmem:[%s1 + $0x38] sm:$0xff]
    %v88 = vld [vmem:[#allocation5] sm:$0x3]
    %v90 = vperm.slane %v88, 0
    %v91 = vperm.slane %v88, 1
    %vm94 = vcmask 261120
    %v96 = vsel %vm94, %v72, 0
    %v99 = vsel %vm94, %v73, 0
    %v102 = vsel %vm94, %v74, 0
    %v105 = vsel %vm94, %v75, 0
    %v108 = vsel %vm94, %v76, 0
    %v111 = vsel %vm94, %v77, 0
    %v114 = vsel %vm94, %v78, 0
    %v117 = vsel %vm94, %v79, 0
    %119 = vmatpush.msra.mxu0 0.0
    %120 = vmatpush.msra.mxu0 0.0
    %121 = vmatpush.msra.mxu0 0.0
    %122 = vmatpush.msra.mxu0 0.0
    %123 = vmatpush.msra.mxu0 0.0
    %124 = vmatpush.msra.mxu0 0.0
    %125 = vmatpush.msra.mxu0 0.0
    %126 = vmatpush.msra.mxu0 0.0
    %127 = vmatpush.msra.mxu0 0.0
    %128 = vmatpush.msra.mxu0 0.0
    %129 = vmatpush.msra.mxu0 0.0
    %130 = vmatpush.msra.mxu0 0.0
    %131 = vmatpush.msra.mxu0 %v86
    %132 = vmatpush.msra.mxu0 %v84
    %133 = vmatpush.msra.mxu0 %v82
    %134 = vmatpush.msra.mxu0 %v80
    %135 = vmatmul.f32.gmra.mxu0 %v96
    %v136 = vpop.f32.mrf.mxu0
    %v137 = vadd.f32 %v90, %v136
    %138 = vmatmul.f32.gmra.mxu0 %v99
    %v139 = vpop.f32.mrf.mxu0
    %v140 = vadd.f32 %v90, %v139
    %141 = vmatmul.f32.gmra.mxu0 %v102
    %v142 = vpop.f32.mrf.mxu0
    %v143 = vadd.f32 %v90, %v142
    %144 = vmatmul.f32.gmra.mxu0 %v105
    %v145 = vpop.f32.mrf.mxu0
    %v146 = vadd.f32 %v90, %v145
    %147 = vmatmul.f32.gmra.mxu0 %v108
    %v148 = vpop.f32.mrf.mxu0
    %v149 = vadd.f32 %v90, %v148
    %150 = vmatmul.f32.gmra.mxu0 %v111
    %v151 = vpop.f32.mrf.mxu0
    %v152 = vadd.f32 %v90, %v151
    %153 = vmatmul.f32.gmra.mxu0 %v114
    %v154 = vpop.f32.mrf.mxu0
    %v155 = vadd.f32 %v90, %v154
    %156 = vmatmul.f32.gmra.mxu0 %v117
    %v157 = vpop.f32.mrf.mxu0
    %v158 = vadd.f32 %v90, %v157
    %159 = vdwg.mxu0
    %160 = vmatpush.msra.mxu0 0.0
    %161 = vmatpush.msra.mxu0 0.0
    %162 = vmatpush.msra.mxu0 0.0
    %163 = vmatpush.msra.mxu0 0.0
    %164 = vmatpush.msra.mxu0 0.0
    %165 = vmatpush.msra.mxu0 0.0
    %166 = vmatpush.msra.mxu0 0.0
    %167 = vmatpush.msra.mxu0 0.0
    %168 = vmatpush.msra.mxu0 0.0
    %169 = vmatpush.msra.mxu0 0.0
    %170 = vmatpush.msra.mxu0 0.0
    %171 = vmatpush.msra.mxu0 0.0
    %172 = vmatpush.msra.mxu0 %v87
    %173 = vmatpush.msra.mxu0 %v85
    %174 = vmatpush.msra.mxu0 %v83
    %175 = vmatpush.msra.mxu0 %v81
    %176 = vmatmul.f32.gmra.mxu0 %v96
    %v177 = vpop.f32.mrf.mxu0
    %v178 = vadd.f32 %v91, %v177
    %179 = vmatmul.f32.gmra.mxu0 %v99
    %v180 = vpop.f32.mrf.mxu0
    %v181 = vadd.f32 %v91, %v180
    %182 = vmatmul.f32.gmra.mxu0 %v102
    %v183 = vpop.f32.mrf.mxu0
    %v184 = vadd.f32 %v91, %v183
    %185 = vmatmul.f32.gmra.mxu0 %v105
    %v186 = vpop.f32.mrf.mxu0
    %v187 = vadd.f32 %v91, %v186
    %188 = vmatmul.f32.gmra.mxu0 %v108
    %v189 = vpop.f32.mrf.mxu0
    %v190 = vadd.f32 %v91, %v189
    %191 = vmatmul.f32.gmra.mxu0 %v111
    %v192 = vpop.f32.mrf.mxu0
    %v193 = vadd.f32 %v91, %v192
    %194 = vmatmul.f32.gmra.mxu0 %v114
    %v195 = vpop.f32.mrf.mxu0
    %v196 = vadd.f32 %v91, %v195
    %197 = vmatmul.f32.gmra.mxu0 %v117
    %v198 = vpop.f32.mrf.mxu0
    %v199 = vadd.f32 %v91, %v198
    %200 = vdwg.mxu0
    %201 = vst [vmem:[#allocation2] sm:$0xff] %v137
    %202 = vst [vmem:[#allocation2 + $0x8] sm:$0xff] %v178
    %203 = vst [vmem:[#allocation2 + $0x10] sm:$0xff] %v140
    %204 = vst [vmem:[#allocation2 + $0x18] sm:$0xff] %v181
    %205 = vst [vmem:[#allocation2 + $0x20] sm:$0xff] %v143
    %206 = vst [vmem:[#allocation2 + $0x28] sm:$0xff] %v184
    %207 = vst [vmem:[#allocation2 + $0x30] sm:$0xff] %v146
    %208 = vst [vmem:[#allocation2 + $0x38] sm:$0xff] %v187
    %209 = vst [vmem:[#allocation2 + $0x40] sm:$0xff] %v149
    %210 = vst [vmem:[#allocation2 + $0x48] sm:$0xff] %v190
    %211 = vst [vmem:[#allocation2 + $0x50] sm:$0xff] %v152
    %212 = vst [vmem:[#allocation2 + $0x58] sm:$0xff] %v193
    %213 = vst [vmem:[#allocation2 + $0x60] sm:$0xff] %v155
    %214 = vst [vmem:[#allocation2 + $0x68] sm:$0xff] %v196
    %215 = vst [vmem:[#allocation2 + $0x70] sm:$0xff] %v158
    %216 = vst [vmem:[#allocation2 + $0x78] sm:$0xff] %v199
    %v217 = vld [vmem:[#allocation8] sm:$0xff]
    %v218 = vld [vmem:[#allocation8 + $0x8] sm:$0xff]
    %v219 = vld [vmem:[#allocation8 + $0x10] sm:$0xff]
    %v220 = vld [vmem:[#allocation8 + $0x18] sm:$0xff]
    %v221 = vld [vmem:[#allocation8 + $0x20] sm:$0xff]
    %v222 = vld [vmem:[#allocation8 + $0x28] sm:$0xff]
    %v223 = vld [vmem:[#allocation8 + $0x30] sm:$0xff]
    %v224 = vld [vmem:[#allocation8 + $0x38] sm:$0xff]
    %v225 = vld [vmem:[#allocation8 + $0x40] sm:$0xff]
    %v226 = vld [vmem:[#allocation8 + $0x48] sm:$0xff]
    %v227 = vld [vmem:[#allocation8 + $0x50] sm:$0xff]
    %v228 = vld [vmem:[#allocation8 + $0x58] sm:$0xff]
    %v229 = vld [vmem:[#allocation8 + $0x60] sm:$0xff]
    %v230 = vld [vmem:[#allocation8 + $0x68] sm:$0xff]
    %v231 = vld [vmem:[#allocation8 + $0x70] sm:$0xff]
    %v232 = vld [vmem:[#allocation8 + $0x78] sm:$0xff]
    %v233 = vlaneseq
    %v234 = vand.u32 %v233, 127
    %v235 = vadd.s32 %v234, 128
    %vm236 = vcmp.lt.s32.totalorder %v234, 192
    %vm237 = vcmp.lt.s32.totalorder %v235, 192
    %s238 = smul.u32 0, 2
    %s239 = smul.addr %s238, 8
    %s240 = scalar_lea.vmem [#allocation2], %s239
    %v241 = vld [vmem:[%s240] sm:$0xff]
    %v242 = vld [vmem:[%s240 + $0x8] sm:$0xff]
    %vm243 = vcmask 523264
    %v245 = vsel %vm243, 0.0, 0
    %247 = vmatpush.msra.mxu0 0.0
    %248 = vmatpush.msra.mxu0 0.0
    %249 = vmatpush.msra.mxu0 0.0
    %250 = vmatpush.msra.mxu0 0.0
    %251 = vmatpush.msra.mxu0 0.0
    %252 = vmatpush.msra.mxu0 0.0
    %253 = vmatpush.msra.mxu0 0.0
    %254 = vmatpush.msra.mxu0 0.0
    %255 = vmatpush.msra.mxu0 %v231
    %256 = vmatpush.msra.mxu0 %v229
    %257 = vmatpush.msra.mxu0 %v227
    %258 = vmatpush.msra.mxu0 %v225
    %259 = vmatpush.msra.mxu0 %v223
    %260 = vmatpush.msra.mxu0 %v221
    %261 = vmatpush.msra.mxu0 %v219
    %262 = vmatpush.msra.mxu0 %v217
    %263 = vmatmul.f32.gmra.mxu0 %v245
    %v264 = vpop.f32.mrf.mxu0
    %v265 = vadd.f32 %v241, %v264
    %266 = vdwg.mxu0
    %267 = vmatpush.msra.mxu0 0.0
    %268 = vmatpush.msra.mxu0 0.0
    %269 = vmatpush.msra.mxu0 0.0
    %270 = vmatpush.msra.mxu0 0.0
    %271 = vmatpush.msra.mxu0 0.0
    %272 = vmatpush.msra.mxu0 0.0
    %273 = vmatpush.msra.mxu0 0.0
    %274 = vmatpush.msra.mxu0 0.0
    %275 = vmatpush.msra.mxu0 %v232
    %276 = vmatpush.msra.mxu0 %v230
    %277 = vmatpush.msra.mxu0 %v228
    %278 = vmatpush.msra.mxu0 %v226
    %279 = vmatpush.msra.mxu0 %v224
    %280 = vmatpush.msra.mxu0 %v222
    %281 = vmatpush.msra.mxu0 %v220
    %282 = vmatpush.msra.mxu0 %v218
    %283 = vmatmul.f32.gmra.mxu0 %v245
    %v284 = vpop.f32.mrf.mxu0
    %v285 = vadd.f32 %v242, %v284
    %286 = vdwg.mxu0
    %v287 = vxor.u32 %v265, 2147483648
    %v288 = vxor.u32 %v285, 2147483648
    %v289 = vmul.f32 %v287, 1.442695
    %v290 = vpow.pop %v289
    %v291 = vmul.f32 %v288, 1.442695
    %v292 = vpow.pop %v291
    %v293 = vadd.f32 %v290, 1.0
    %v294 = vadd.f32 %v292, 1.0
    %v295 = vrcp.pop %v293
    %v296 = vmul.f32 %v293, %v295
    %v297 = vsub.f32 1.0, %v296
    %v298 = vmul.f32 %v295, %v297
    %v299 = vadd.f32 %v295, %v298
    %vm300 = vweird.f32 %v293
    %vm301 = vweird.f32 %v295
    %vm302 = vmor %vm300, %vm301
    %v303 = vsel %vm302, %v295, %v299
    %v304 = vand.u32 2147483647, %v293
    %vm305 = vcmp.eq.f32.partialorder %v304, 8.507059e+37
    %v306 = vand.u32 %v293, 2147483648
    %v307 = vor.u32 1.1754944e-38, %v306
    %v308 = vsel %vm305, %v307, %v303
    %v309 = vmul.f32 1.0, %v308
    %v310 = vrcp.pop %v294
    %v311 = vmul.f32 %v294, %v310
    %v312 = vsub.f32 1.0, %v311
    %v313 = vmul.f32 %v310, %v312
    %v314 = vadd.f32 %v310, %v313
    %vm315 = vweird.f32 %v294
    %vm316 = vweird.f32 %v310
    %vm317 = vmor %vm315, %vm316
    %v318 = vsel %vm317, %v310, %v314
    %v319 = vand.u32 2147483647, %v294
    %vm320 = vcmp.eq.f32.partialorder %v319, 8.507059e+37
    %v321 = vand.u32 %v294, 2147483648
    %v322 = vor.u32 1.1754944e-38, %v321
    %v323 = vsel %vm320, %v322, %v318
    %v324 = vmul.f32 1.0, %v323
    %v325 = vtanh.pop %v265
    %v326 = vtanh.pop %v285
    %v327 = vsel %vm236, %v309, %v325
    %v328 = vsel %vm237, %v324, %v326
    %v329 = vmul.f32 %v327, 0.0
    %331 = vrot.lane.b32.xlu0 %v328, 64
    %v332 = vpop.permute.xlu0 %331
    %v334 = vmul.f32 %v327, %v332
    %336 = vrot.lane.b32.xlu0 %v334, 64
    %v337 = vpop.permute.xlu0 %336
    %v339 = vadd.f32 %v329, %v337
    %v340 = vtanh.pop %v339
    %342 = vrot.lane.b32.xlu0 %v340, 64
    %v343 = vpop.permute.xlu0 %342
    %v345 = vmul.f32 %v328, %v343
    %346 = vst.msk [vmem:[#allocation3] sm:$0xff] %vm94, %v345
    %348 = vrot.lane.b32.xlu0 %v345, 96
    %v349 = vpop.permute.xlu0 %348
    %s351 = scalar_lea.vmem [#allocation4], 56
    %352 = vst.msk [vmem:[%s351] sm:$0xff] %vm94, %v349
    %s353 = smul.u32 1, 2
    %s354 = smul.addr %s353, 8
    %s355 = scalar_lea.vmem [#allocation2], %s354
    %v356 = vld [vmem:[%s355] sm:$0xff]
    %v357 = vld [vmem:[%s355 + $0x8] sm:$0xff]
    %v358 = vsel %vm243, %v345, 0
    %360 = vmatpush.msra.mxu0 0.0
    %361 = vmatpush.msra.mxu0 0.0
    %362 = vmatpush.msra.mxu0 0.0
    %363 = vmatpush.msra.mxu0 0.0
    %364 = vmatpush.msra.mxu0 0.0
    %365 = vmatpush.msra.mxu0 0.0
    %366 = vmatpush.msra.mxu0 0.0
    %367 = vmatpush.msra.mxu0 0.0
    %368 = vmatpush.msra.mxu0 %v231
    %369 = vmatpush.msra.mxu0 %v229
    %370 = vmatpush.msra.mxu0 %v227
    %371 = vmatpush.msra.mxu0 %v225
    %372 = vmatpush.msra.mxu0 %v223
    %373 = vmatpush.msra.mxu0 %v221
    %374 = vmatpush.msra.mxu0 %v219
    %375 = vmatpush.msra.mxu0 %v217
    %376 = vmatmul.f32.gmra.mxu0 %v358
    %v377 = vpop.f32.mrf.mxu0
    %v378 = vadd.f32 %v356, %v377
    %379 = vdwg.mxu0
    %380 = vmatpush.msra.mxu0 0.0
    %381 = vmatpush.msra.mxu0 0.0
    %382 = vmatpush.msra.mxu0 0.0
    %383 = vmatpush.msra.mxu0 0.0
    %384 = vmatpush.msra.mxu0 0.0
    %385 = vmatpush.msra.mxu0 0.0
    %386 = vmatpush.msra.mxu0 0.0
    %387 = vmatpush.msra.mxu0 0.0
    %388 = vmatpush.msra.mxu0 %v232
    %389 = vmatpush.msra.mxu0 %v230
    %390 = vmatpush.msra.mxu0 %v228
    %391 = vmatpush.msra.mxu0 %v226
    %392 = vmatpush.msra.mxu0 %v224
    %393 = vmatpush.msra.mxu0 %v222
    %394 = vmatpush.msra.mxu0 %v220
    %395 = vmatpush.msra.mxu0 %v218
    %396 = vmatmul.f32.gmra.mxu0 %v358
    %v397 = vpop.f32.mrf.mxu0
    %v398 = vadd.f32 %v357, %v397
    %399 = vdwg.mxu0
    %v400 = vxor.u32 %v378, 2147483648
    %v401 = vxor.u32 %v398, 2147483648
    %v402 = vmul.f32 %v400, 1.442695
    %v403 = vpow.pop %v402
    %v404 = vmul.f32 %v401, 1.442695
    %v405 = vpow.pop %v404
    %v406 = vadd.f32 %v403, 1.0
    %v407 = vadd.f32 %v405, 1.0
    %v408 = vrcp.pop %v406
    %v409 = vmul.f32 %v406, %v408
    %v410 = vsub.f32 1.0, %v409
    %v411 = vmul.f32 %v408, %v410
    %v412 = vadd.f32 %v408, %v411
    %vm413 = vweird.f32 %v406
    %vm414 = vweird.f32 %v408
    %vm415 = vmor %vm413, %vm414
    %v416 = vsel %vm415, %v408, %v412
    %v417 = vand.u32 2147483647, %v406
    %vm418 = vcmp.eq.f32.partialorder %v417, 8.507059e+37
    %v419 = vand.u32 %v406, 2147483648
    %v420 = vor.u32 1.1754944e-38, %v419
    %v421 = vsel %vm418, %v420, %v416
    %v422 = vmul.f32 1.0, %v421
    %v423 = vrcp.pop %v407
    %v424 = vmul.f32 %v407, %v423
    %v425 = vsub.f32 1.0, %v424
    %v426 = vmul.f32 %v423, %v425
    %v427 = vadd.f32 %v423, %v426
    %vm428 = vweird.f32 %v407
    %vm429 = vweird.f32 %v423
    %vm430 = vmor %vm428, %vm429
    %v431 = vsel %vm430, %v423, %v427
    %v432 = vand.u32 2147483647, %v407
    %vm433 = vcmp.eq.f32.partialorder %v432, 8.507059e+37
    %v434 = vand.u32 %v407, 2147483648
    %v435 = vor.u32 1.1754944e-38, %v434
    %v436 = vsel %vm433, %v435, %v431
    %v437 = vmul.f32 1.0, %v436
    %v438 = vtanh.pop %v378
    %v439 = vtanh.pop %v398
    %v440 = vsel %vm236, %v422, %v438
    %v441 = vsel %vm237, %v437, %v439
    %v442 = vmul.f32 %v440, %v339
    %444 = vrot.lane.b32.xlu0 %v441, 64
    %v445 = vpop.permute.xlu0 %444
    %v447 = vmul.f32 %v440, %v445
    %449 = vrot.lane.b32.xlu0 %v447, 64
    %v450 = vpop.permute.xlu0 %449
    %v452 = vadd.f32 %v442, %v450
    %v453 = vtanh.pop %v452
    %455 = vrot.lane.b32.xlu0 %v453, 64
    %v456 = vpop.permute.xlu0 %455
    %v458 = vmul.f32 %v441, %v456
    %s459 = scalar_lea.vmem [#allocation3], 8
    %460 = vst.msk [vmem:[%s459] sm:$0xff] %vm94, %v458
    %462 = vrot.lane.b32.xlu0 %v458, 96
    %v463 = vpop.permute.xlu0 %462
    %s465 = scalar_lea.vmem [#allocation4], 48
    %466 = vst.msk [vmem:[%s465] sm:$0xff] %vm94, %v463
    %s467 = smul.u32 2, 2
    %s468 = smul.addr %s467, 8
    %s469 = scalar_lea.vmem [#allocation2], %s468
    %v470 = vld [vmem:[%s469] sm:$0xff]
    %v471 = vld [vmem:[%s469 + $0x8] sm:$0xff]
    %v472 = vsel %vm243, %v458, 0
    %474 = vmatpush.msra.mxu0 0.0
    %475 = vmatpush.msra.mxu0 0.0
    %476 = vmatpush.msra.mxu0 0.0
    %477 = vmatpush.msra.mxu0 0.0
    %478 = vmatpush.msra.mxu0 0.0
    %479 = vmatpush.msra.mxu0 0.0
    %480 = vmatpush.msra.mxu0 0.0
    %481 = vmatpush.msra.mxu0 0.0
    %482 = vmatpush.msra.mxu0 %v231
    %483 = vmatpush.msra.mxu0 %v229
    %484 = vmatpush.msra.mxu0 %v227
    %485 = vmatpush.msra.mxu0 %v225
    %486 = vmatpush.msra.mxu0 %v223
    %487 = vmatpush.msra.mxu0 %v221
    %488 = vmatpush.msra.mxu0 %v219
    %489 = vmatpush.msra.mxu0 %v217
    %490 = vmatmul.f32.gmra.mxu0 %v472
    %v491 = vpop.f32.mrf.mxu0
    %v492 = vadd.f32 %v470, %v491
    %493 = vdwg.mxu0
    %494 = vmatpush.msra.mxu0 0.0
    %495 = vmatpush.msra.mxu0 0.0
    %496 = vmatpush.msra.mxu0 0.0
    %497 = vmatpush.msra.mxu0 0.0
    %498 = vmatpush.msra.mxu0 0.0
    %499 = vmatpush.msra.mxu0 0.0
    %500 = vmatpush.msra.mxu0 0.0
    %501 = vmatpush.msra.mxu0 0.0
    %502 = vmatpush.msra.mxu0 %v232
    %503 = vmatpush.msra.mxu0 %v230
    %504 = vmatpush.msra.mxu0 %v228
    %505 = vmatpush.msra.mxu0 %v226
    %506 = vmatpush.msra.mxu0 %v224
    %507 = vmatpush.msra.mxu0 %v222
    %508 = vmatpush.msra.mxu0 %v220
    %509 = vmatpush.msra.mxu0 %v218
    %510 = vmatmul.f32.gmra.mxu0 %v472
    %v511 = vpop.f32.mrf.mxu0
    %v512 = vadd.f32 %v471, %v511
    %513 = vdwg.mxu0
    %v514 = vxor.u32 %v492, 2147483648
    %v515 = vxor.u32 %v512, 2147483648
    %v516 = vmul.f32 %v514, 1.442695
    %v517 = vpow.pop %v516
    %v518 = vmul.f32 %v515, 1.442695
    %v519 = vpow.pop %v518
    %v520 = vadd.f32 %v517, 1.0
    %v521 = vadd.f32 %v519, 1.0
    %v522 = vrcp.pop %v520
    %v523 = vmul.f32 %v520, %v522
    %v524 = vsub.f32 1.0, %v523
    %v525 = vmul.f32 %v522, %v524
    %v526 = vadd.f32 %v522, %v525
    %vm527 = vweird.f32 %v520
    %vm528 = vweird.f32 %v522
    %vm529 = vmor %vm527, %vm528
    %v530 = vsel %vm529, %v522, %v526
    %v531 = vand.u32 2147483647, %v520
    %vm532 = vcmp.eq.f32.partialorder %v531, 8.507059e+37
    %v533 = vand.u32 %v520, 2147483648
    %v534 = vor.u32 1.1754944e-38, %v533
    %v535 = vsel %vm532, %v534, %v530
    %v536 = vmul.f32 1.0, %v535
    %v537 = vrcp.pop %v521
    %v538 = vmul.f32 %v521, %v537
    %v539 = vsub.f32 1.0, %v538
    %v540 = vmul.f32 %v537, %v539
    %v541 = vadd.f32 %v537, %v540
    %vm542 = vweird.f32 %v521
    %vm543 = vweird.f32 %v537
    %vm544 = vmor %vm542, %vm543
    %v545 = vsel %vm544, %v537, %v541
    %v546 = vand.u32 2147483647, %v521
    %vm547 = vcmp.eq.f32.partialorder %v546, 8.507059e+37
    %v548 = vand.u32 %v521, 2147483648
    %v549 = vor.u32 1.1754944e-38, %v548
    %v550 = vsel %vm547, %v549, %v545
    %v551 = vmul.f32 1.0, %v550
    %v552 = vtanh.pop %v492
    %v553 = vtanh.pop %v512
    %v554 = vsel %vm236, %v536, %v552
    %v555 = vsel %vm237, %v551, %v553
    %v556 = vmul.f32 %v554, %v452
    %558 = vrot.lane.b32.xlu0 %v555, 64
    %v559 = vpop.permute.xlu0 %558
    %v561 = vmul.f32 %v554, %v559
    %563 = vrot.lane.b32.xlu0 %v561, 64
    %v564 = vpop.permute.xlu0 %563
    %v566 = vadd.f32 %v556, %v564
    %v567 = vtanh.pop %v566
    %569 = vrot.lane.b32.xlu0 %v567, 64
    %v570 = vpop.permute.xlu0 %569
    %v572 = vmul.f32 %v555, %v570
    %s573 = scalar_lea.vmem [#allocation3], 16
    %574 = vst.msk [vmem:[%s573] sm:$0xff] %vm94, %v572
    %576 = vrot.lane.b32.xlu0 %v572, 96
    %v577 = vpop.permute.xlu0 %576
    %s579 = scalar_lea.vmem [#allocation4], 40
    %580 = vst.msk [vmem:[%s579] sm:$0xff] %vm94, %v577
    %s581 = smul.u32 3, 2
    %s582 = smul.addr %s581, 8
    %s583 = scalar_lea.vmem [#allocation2], %s582
    %v584 = vld [vmem:[%s583] sm:$0xff]
    %v585 = vld [vmem:[%s583 + $0x8] sm:$0xff]
    %v586 = vsel %vm243, %v572, 0
    %588 = vmatpush.msra.mxu0 0.0
    %589 = vmatpush.msra.mxu0 0.0
    %590 = vmatpush.msra.mxu0 0.0
    %591 = vmatpush.msra.mxu0 0.0
    %592 = vmatpush.msra.mxu0 0.0
    %593 = vmatpush.msra.mxu0 0.0
    %594 = vmatpush.msra.mxu0 0.0
    %595 = vmatpush.msra.mxu0 0.0
    %596 = vmatpush.msra.mxu0 %v231
    %597 = vmatpush.msra.mxu0 %v229
    %598 = vmatpush.msra.mxu0 %v227
    %599 = vmatpush.msra.mxu0 %v225
    %600 = vmatpush.msra.mxu0 %v223
    %601 = vmatpush.msra.mxu0 %v221
    %602 = vmatpush.msra.mxu0 %v219
    %603 = vmatpush.msra.mxu0 %v217
    %604 = vmatmul.f32.gmra.mxu0 %v586
    %v605 = vpop.f32.mrf.mxu0
    %v606 = vadd.f32 %v584, %v605
    %607 = vdwg.mxu0
    %608 = vmatpush.msra.mxu0 0.0
    %609 = vmatpush.msra.mxu0 0.0
    %610 = vmatpush.msra.mxu0 0.0
    %611 = vmatpush.msra.mxu0 0.0
    %612 = vmatpush.msra.mxu0 0.0
    %613 = vmatpush.msra.mxu0 0.0
    %614 = vmatpush.msra.mxu0 0.0
    %615 = vmatpush.msra.mxu0 0.0
    %616 = vmatpush.msra.mxu0 %v232
    %617 = vmatpush.msra.mxu0 %v230
    %618 = vmatpush.msra.mxu0 %v228
    %619 = vmatpush.msra.mxu0 %v226
    %620 = vmatpush.msra.mxu0 %v224
    %621 = vmatpush.msra.mxu0 %v222
    %622 = vmatpush.msra.mxu0 %v220
    %623 = vmatpush.msra.mxu0 %v218
    %624 = vmatmul.f32.gmra.mxu0 %v586
    %v625 = vpop.f32.mrf.mxu0
    %v626 = vadd.f32 %v585, %v625
    %627 = vdwg.mxu0
    %v628 = vxor.u32 %v606, 2147483648
    %v629 = vxor.u32 %v626, 2147483648
    %v630 = vmul.f32 %v628, 1.442695
    %v631 = vpow.pop %v630
    %v632 = vmul.f32 %v629, 1.442695
    %v633 = vpow.pop %v632
    %v634 = vadd.f32 %v631, 1.0
    %v635 = vadd.f32 %v633, 1.0
    %v636 = vrcp.pop %v634
    %v637 = vmul.f32 %v634, %v636
    %v638 = vsub.f32 1.0, %v637
    %v639 = vmul.f32 %v636, %v638
    %v640 = vadd.f32 %v636, %v639
    %vm641 = vweird.f32 %v634
    %vm642 = vweird.f32 %v636
    %vm643 = vmor %vm641, %vm642
    %v644 = vsel %vm643, %v636, %v640
    %v645 = vand.u32 2147483647, %v634
    %vm646 = vcmp.eq.f32.partialorder %v645, 8.507059e+37
    %v647 = vand.u32 %v634, 2147483648
    %v648 = vor.u32 1.1754944e-38, %v647
    %v649 = vsel %vm646, %v648, %v644
    %v650 = vmul.f32 1.0, %v649
    %v651 = vrcp.pop %v635
    %v652 = vmul.f32 %v635, %v651
    %v653 = vsub.f32 1.0, %v652
    %v654 = vmul.f32 %v651, %v653
    %v655 = vadd.f32 %v651, %v654
    %vm656 = vweird.f32 %v635
    %vm657 = vweird.f32 %v651
    %vm658 = vmor %vm656, %vm657
    %v659 = vsel %vm658, %v651, %v655
    %v660 = vand.u32 2147483647, %v635
    %vm661 = vcmp.eq.f32.partialorder %v660, 8.507059e+37
    %v662 = vand.u32 %v635, 2147483648
    %v663 = vor.u32 1.1754944e-38, %v662
    %v664 = vsel %vm661, %v663, %v659
    %v665 = vmul.f32 1.0, %v664
    %v666 = vtanh.pop %v606
    %v667 = vtanh.pop %v626
    %v668 = vsel %vm236, %v650, %v666
    %v669 = vsel %vm237, %v665, %v667
    %v670 = vmul.f32 %v668, %v566
    %672 = vrot.lane.b32.xlu0 %v669, 64
    %v673 = vpop.permute.xlu0 %672
    %v675 = vmul.f32 %v668, %v673
    %677 = vrot.lane.b32.xlu0 %v675, 64
    %v678 = vpop.permute.xlu0 %677
    %v680 = vadd.f32 %v670, %v678
    %v681 = vtanh.pop %v680
    %683 = vrot.lane.b32.xlu0 %v681, 64
    %v684 = vpop.permute.xlu0 %683
    %v686 = vmul.f32 %v669, %v684
    %s687 = scalar_lea.vmem [#allocation3], 24
    %688 = vst.msk [vmem:[%s687] sm:$0xff] %vm94, %v686
    %690 = vrot.lane.b32.xlu0 %v686, 96
    %v691 = vpop.permute.xlu0 %690
    %s693 = scalar_lea.vmem [#allocation4], 32
    %694 = vst.msk [vmem:[%s693] sm:$0xff] %vm94, %v691
    %s695 = smul.u32 4, 2
    %s696 = smul.addr %s695, 8
    %s697 = scalar_lea.vmem [#allocation2], %s696
    %v698 = vld [vmem:[%s697] sm:$0xff]
    %v699 = vld [vmem:[%s697 + $0x8] sm:$0xff]
    %v700 = vsel %vm243, %v686, 0
    %702 = vmatpush.msra.mxu0 0.0
    %703 = vmatpush.msra.mxu0 0.0
    %704 = vmatpush.msra.mxu0 0.0
    %705 = vmatpush.msra.mxu0 0.0
    %706 = vmatpush.msra.mxu0 0.0
    %707 = vmatpush.msra.mxu0 0.0
    %708 = vmatpush.msra.mxu0 0.0
    %709 = vmatpush.msra.mxu0 0.0
    %710 = vmatpush.msra.mxu0 %v231
    %711 = vmatpush.msra.mxu0 %v229
    %712 = vmatpush.msra.mxu0 %v227
    %713 = vmatpush.msra.mxu0 %v225
    %714 = vmatpush.msra.mxu0 %v223
    %715 = vmatpush.msra.mxu0 %v221
    %716 = vmatpush.msra.mxu0 %v219
    %717 = vmatpush.msra.mxu0 %v217
    %718 = vmatmul.f32.gmra.mxu0 %v700
    %v719 = vpop.f32.mrf.mxu0
    %v720 = vadd.f32 %v698, %v719
    %721 = vdwg.mxu0
    %722 = vmatpush.msra.mxu0 0.0
    %723 = vmatpush.msra.mxu0 0.0
    %724 = vmatpush.msra.mxu0 0.0
    %725 = vmatpush.msra.mxu0 0.0
    %726 = vmatpush.msra.mxu0 0.0
    %727 = vmatpush.msra.mxu0 0.0
    %728 = vmatpush.msra.mxu0 0.0
    %729 = vmatpush.msra.mxu0 0.0
    %730 = vmatpush.msra.mxu0 %v232
    %731 = vmatpush.msra.mxu0 %v230
    %732 = vmatpush.msra.mxu0 %v228
    %733 = vmatpush.msra.mxu0 %v226
    %734 = vmatpush.msra.mxu0 %v224
    %735 = vmatpush.msra.mxu0 %v222
    %736 = vmatpush.msra.mxu0 %v220
    %737 = vmatpush.msra.mxu0 %v218
    %738 = vmatmul.f32.gmra.mxu0 %v700
    %v739 = vpop.f32.mrf.mxu0
    %v740 = vadd.f32 %v699, %v739
    %741 = vdwg.mxu0
    %v742 = vxor.u32 %v720, 2147483648
    %v743 = vxor.u32 %v740, 2147483648
    %v744 = vmul.f32 %v742, 1.442695
    %v745 = vpow.pop %v744
    %v746 = vmul.f32 %v743, 1.442695
    %v747 = vpow.pop %v746
    %v748 = vadd.f32 %v745, 1.0
    %v749 = vadd.f32 %v747, 1.0
    %v750 = vrcp.pop %v748
    %v751 = vmul.f32 %v748, %v750
    %v752 = vsub.f32 1.0, %v751
    %v753 = vmul.f32 %v750, %v752
    %v754 = vadd.f32 %v750, %v753
    %vm755 = vweird.f32 %v748
    %vm756 = vweird.f32 %v750
    %vm757 = vmor %vm755, %vm756
    %v758 = vsel %vm757, %v750, %v754
    %v759 = vand.u32 2147483647, %v748
    %vm760 = vcmp.eq.f32.partialorder %v759, 8.507059e+37
    %v761 = vand.u32 %v748, 2147483648
    %v762 = vor.u32 1.1754944e-38, %v761
    %v763 = vsel %vm760, %v762, %v758
    %v764 = vmul.f32 1.0, %v763
    %v765 = vrcp.pop %v749
    %v766 = vmul.f32 %v749, %v765
    %v767 = vsub.f32 1.0, %v766
    %v768 = vmul.f32 %v765, %v767
    %v769 = vadd.f32 %v765, %v768
    %vm770 = vweird.f32 %v749
    %vm771 = vweird.f32 %v765
    %vm772 = vmor %vm770, %vm771
    %v773 = vsel %vm772, %v765, %v769
    %v774 = vand.u32 2147483647, %v749
    %vm775 = vcmp.eq.f32.partialorder %v774, 8.507059e+37
    %v776 = vand.u32 %v749, 2147483648
    %v777 = vor.u32 1.1754944e-38, %v776
    %v778 = vsel %vm775, %v777, %v773
    %v779 = vmul.f32 1.0, %v778
    %v780 = vtanh.pop %v720
    %v781 = vtanh.pop %v740
    %v782 = vsel %vm236, %v764, %v780
    %v783 = vsel %vm237, %v779, %v781
    %v784 = vmul.f32 %v782, %v680
    %786 = vrot.lane.b32.xlu0 %v783, 64
    %v787 = vpop.permute.xlu0 %786
    %v789 = vmul.f32 %v782, %v787
    %791 = vrot.lane.b32.xlu0 %v789, 64
    %v792 = vpop.permute.xlu0 %791
    %v794 = vadd.f32 %v784, %v792
    %v795 = vtanh.pop %v794
    %797 = vrot.lane.b32.xlu0 %v795, 64
    %v798 = vpop.permute.xlu0 %797
    %v800 = vmul.f32 %v783, %v798
    %s801 = scalar_lea.vmem [#allocation3], 32
    %802 = vst.msk [vmem:[%s801] sm:$0xff] %vm94, %v800
    %804 = vrot.lane.b32.xlu0 %v800, 96
    %v805 = vpop.permute.xlu0 %804
    %s807 = scalar_lea.vmem [#allocation4], 24
    %808 = vst.msk [vmem:[%s807] sm:$0xff] %vm94, %v805
    %s809 = smul.u32 5, 2
    %s810 = smul.addr %s809, 8
    %s811 = scalar_lea.vmem [#allocation2], %s810
    %v812 = vld [vmem:[%s811] sm:$0xff]
    %v813 = vld [vmem:[%s811 + $0x8] sm:$0xff]
    %v814 = vsel %vm243, %v800, 0
    %816 = vmatpush.msra.mxu0 0.0
    %817 = vmatpush.msra.mxu0 0.0
    %818 = vmatpush.msra.mxu0 0.0
    %819 = vmatpush.msra.mxu0 0.0
    %820 = vmatpush.msra.mxu0 0.0
    %821 = vmatpush.msra.mxu0 0.0
    %822 = vmatpush.msra.mxu0 0.0
    %823 = vmatpush.msra.mxu0 0.0
    %824 = vmatpush.msra.mxu0 %v231
    %825 = vmatpush.msra.mxu0 %v229
    %826 = vmatpush.msra.mxu0 %v227
    %827 = vmatpush.msra.mxu0 %v225
    %828 = vmatpush.msra.mxu0 %v223
    %829 = vmatpush.msra.mxu0 %v221
    %830 = vmatpush.msra.mxu0 %v219
    %831 = vmatpush.msra.mxu0 %v217
    %832 = vmatmul.f32.gmra.mxu0 %v814
    %v833 = vpop.f32.mrf.mxu0
    %v834 = vadd.f32 %v812, %v833
    %835 = vdwg.mxu0
    %836 = vmatpush.msra.mxu0 0.0
    %837 = vmatpush.msra.mxu0 0.0
    %838 = vmatpush.msra.mxu0 0.0
    %839 = vmatpush.msra.mxu0 0.0
    %840 = vmatpush.msra.mxu0 0.0
    %841 = vmatpush.msra.mxu0 0.0
    %842 = vmatpush.msra.mxu0 0.0
    %843 = vmatpush.msra.mxu0 0.0
    %844 = vmatpush.msra.mxu0 %v232
    %845 = vmatpush.msra.mxu0 %v230
    %846 = vmatpush.msra.mxu0 %v228
    %847 = vmatpush.msra.mxu0 %v226
    %848 = vmatpush.msra.mxu0 %v224
    %849 = vmatpush.msra.mxu0 %v222
    %850 = vmatpush.msra.mxu0 %v220
    %851 = vmatpush.msra.mxu0 %v218
    %852 = vmatmul.f32.gmra.mxu0 %v814
    %v853 = vpop.f32.mrf.mxu0
    %v854 = vadd.f32 %v813, %v853
    %855 = vdwg.mxu0
    %v856 = vxor.u32 %v834, 2147483648
    %v857 = vxor.u32 %v854, 2147483648
    %v858 = vmul.f32 %v856, 1.442695
    %v859 = vpow.pop %v858
    %v860 = vmul.f32 %v857, 1.442695
    %v861 = vpow.pop %v860
    %v862 = vadd.f32 %v859, 1.0
    %v863 = vadd.f32 %v861, 1.0
    %v864 = vrcp.pop %v862
    %v865 = vmul.f32 %v862, %v864
    %v866 = vsub.f32 1.0, %v865
    %v867 = vmul.f32 %v864, %v866
    %v868 = vadd.f32 %v864, %v867
    %vm869 = vweird.f32 %v862
    %vm870 = vweird.f32 %v864
    %vm871 = vmor %vm869, %vm870
    %v872 = vsel %vm871, %v864, %v868
    %v873 = vand.u32 2147483647, %v862
    %vm874 = vcmp.eq.f32.partialorder %v873, 8.507059e+37
    %v875 = vand.u32 %v862, 2147483648
    %v876 = vor.u32 1.1754944e-38, %v875
    %v877 = vsel %vm874, %v876, %v872
    %v878 = vmul.f32 1.0, %v877
    %v879 = vrcp.pop %v863
    %v880 = vmul.f32 %v863, %v879
    %v881 = vsub.f32 1.0, %v880
    %v882 = vmul.f32 %v879, %v881
    %v883 = vadd.f32 %v879, %v882
    %vm884 = vweird.f32 %v863
    %vm885 = vweird.f32 %v879
    %vm886 = vmor %vm884, %vm885
    %v887 = vsel %vm886, %v879, %v883
    %v888 = vand.u32 2147483647, %v863
    %vm889 = vcmp.eq.f32.partialorder %v888, 8.507059e+37
    %v890 = vand.u32 %v863, 2147483648
    %v891 = vor.u32 1.1754944e-38, %v890
    %v892 = vsel %vm889, %v891, %v887
    %v893 = vmul.f32 1.0, %v892
    %v894 = vtanh.pop %v834
    %v895 = vtanh.pop %v854
    %v896 = vsel %vm236, %v878, %v894
    %v897 = vsel %vm237, %v893, %v895
    %v898 = vmul.f32 %v896, %v794
    %900 = vrot.lane.b32.xlu0 %v897, 64
    %v901 = vpop.permute.xlu0 %900
    %v903 = vmul.f32 %v896, %v901
    %905 = vrot.lane.b32.xlu0 %v903, 64
    %v906 = vpop.permute.xlu0 %905
    %v908 = vadd.f32 %v898, %v906
    %v909 = vtanh.pop %v908
    %911 = vrot.lane.b32.xlu0 %v909, 64
    %v912 = vpop.permute.xlu0 %911
    %v914 = vmul.f32 %v897, %v912
    %s915 = scalar_lea.vmem [#allocation3], 40
    %916 = vst.msk [vmem:[%s915] sm:$0xff] %vm94, %v914
    %918 = vrot.lane.b32.xlu0 %v914, 96
    %v919 = vpop.permute.xlu0 %918
    %s921 = scalar_lea.vmem [#allocation4], 16
    %922 = vst.msk [vmem:[%s921] sm:$0xff] %vm94, %v919
    %s923 = smul.u32 6, 2
    %s924 = smul.addr %s923, 8
    %s925 = scalar_lea.vmem [#allocation2], %s924
    %v926 = vld [vmem:[%s925] sm:$0xff]
    %v927 = vld [vmem:[%s925 + $0x8] sm:$0xff]
    %v928 = vsel %vm243, %v914, 0
    %930 = vmatpush.msra.mxu0 0.0
    %931 = vmatpush.msra.mxu0 0.0
    %932 = vmatpush.msra.mxu0 0.0
    %933 = vmatpush.msra.mxu0 0.0
    %934 = vmatpush.msra.mxu0 0.0
    %935 = vmatpush.msra.mxu0 0.0
    %936 = vmatpush.msra.mxu0 0.0
    %937 = vmatpush.msra.mxu0 0.0
    %938 = vmatpush.msra.mxu0 %v231
    %939 = vmatpush.msra.mxu0 %v229
    %940 = vmatpush.msra.mxu0 %v227
    %941 = vmatpush.msra.mxu0 %v225
    %942 = vmatpush.msra.mxu0 %v223
    %943 = vmatpush.msra.mxu0 %v221
    %944 = vmatpush.msra.mxu0 %v219
    %945 = vmatpush.msra.mxu0 %v217
    %946 = vmatmul.f32.gmra.mxu0 %v928
    %v947 = vpop.f32.mrf.mxu0
    %v948 = vadd.f32 %v926, %v947
    %949 = vdwg.mxu0
    %950 = vmatpush.msra.mxu0 0.0
    %951 = vmatpush.msra.mxu0 0.0
    %952 = vmatpush.msra.mxu0 0.0
    %953 = vmatpush.msra.mxu0 0.0
    %954 = vmatpush.msra.mxu0 0.0
    %955 = vmatpush.msra.mxu0 0.0
    %956 = vmatpush.msra.mxu0 0.0
    %957 = vmatpush.msra.mxu0 0.0
    %958 = vmatpush.msra.mxu0 %v232
    %959 = vmatpush.msra.mxu0 %v230
    %960 = vmatpush.msra.mxu0 %v228
    %961 = vmatpush.msra.mxu0 %v226
    %962 = vmatpush.msra.mxu0 %v224
    %963 = vmatpush.msra.mxu0 %v222
    %964 = vmatpush.msra.mxu0 %v220
    %965 = vmatpush.msra.mxu0 %v218
    %966 = vmatmul.f32.gmra.mxu0 %v928
    %v967 = vpop.f32.mrf.mxu0
    %v968 = vadd.f32 %v927, %v967
    %969 = vdwg.mxu0
    %v970 = vxor.u32 %v948, 2147483648
    %v971 = vxor.u32 %v968, 2147483648
    %v972 = vmul.f32 %v970, 1.442695
    %v973 = vpow.pop %v972
    %v974 = vmul.f32 %v971, 1.442695
    %v975 = vpow.pop %v974
    %v976 = vadd.f32 %v973, 1.0
    %v977 = vadd.f32 %v975, 1.0
    %v978 = vrcp.pop %v976
    %v979 = vmul.f32 %v976, %v978
    %v980 = vsub.f32 1.0, %v979
    %v981 = vmul.f32 %v978, %v980
    %v982 = vadd.f32 %v978, %v981
    %vm983 = vweird.f32 %v976
    %vm984 = vweird.f32 %v978
    %vm985 = vmor %vm983, %vm984
    %v986 = vsel %vm985, %v978, %v982
    %v987 = vand.u32 2147483647, %v976
    %vm988 = vcmp.eq.f32.partialorder %v987, 8.507059e+37
    %v989 = vand.u32 %v976, 2147483648
    %v990 = vor.u32 1.1754944e-38, %v989
    %v991 = vsel %vm988, %v990, %v986
    %v992 = vmul.f32 1.0, %v991
    %v993 = vrcp.pop %v977
    %v994 = vmul.f32 %v977, %v993
    %v995 = vsub.f32 1.0, %v994
    %v996 = vmul.f32 %v993, %v995
    %v997 = vadd.f32 %v993, %v996
    %vm998 = vweird.f32 %v977
    %vm999 = vweird.f32 %v993
    %vm1000 = vmor %vm998, %vm999
    %v1001 = vsel %vm1000, %v993, %v997
    %v1002 = vand.u32 2147483647, %v977
    %vm1003 = vcmp.eq.f32.partialorder %v1002, 8.507059e+37
    %v1004 = vand.u32 %v977, 2147483648
    %v1005 = vor.u32 1.1754944e-38, %v1004
    %v1006 = vsel %vm1003, %v1005, %v1001
    %v1007 = vmul.f32 1.0, %v1006
    %v1008 = vtanh.pop %v948
    %v1009 = vtanh.pop %v968
    %v1010 = vsel %vm236, %v992, %v1008
    %v1011 = vsel %vm237, %v1007, %v1009
    %v1012 = vmul.f32 %v1010, %v908
    %1014 = vrot.lane.b32.xlu0 %v1011, 64
    %v1015 = vpop.permute.xlu0 %1014
    %v1017 = vmul.f32 %v1010, %v1015
    %1019 = vrot.lane.b32.xlu0 %v1017, 64
    %v1020 = vpop.permute.xlu0 %1019
    %v1022 = vadd.f32 %v1012, %v1020
    %v1023 = vtanh.pop %v1022
    %1025 = vrot.lane.b32.xlu0 %v1023, 64
    %v1026 = vpop.permute.xlu0 %1025
    %v1028 = vmul.f32 %v1011, %v1026
    %s1029 = scalar_lea.vmem [#allocation3], 48
    %1030 = vst.msk [vmem:[%s1029] sm:$0xff] %vm94, %v1028
    %1032 = vrot.lane.b32.xlu0 %v1028, 96
    %v1033 = vpop.permute.xlu0 %1032
    %s1035 = scalar_lea.vmem [#allocation4], 8
    %1036 = vst.msk [vmem:[%s1035] sm:$0xff] %vm94, %v1033
    %s1037 = smul.u32 7, 2
    %s1038 = smul.addr %s1037, 8
    %s1039 = scalar_lea.vmem [#allocation2], %s1038
    %v1040 = vld [vmem:[%s1039] sm:$0xff]
    %v1041 = vld [vmem:[%s1039 + $0x8] sm:$0xff]
    %v1042 = vsel %vm243, %v1028, 0
    %1044 = vmatpush.msra.mxu0 0.0
    %1045 = vmatpush.msra.mxu0 0.0
    %1046 = vmatpush.msra.mxu0 0.0
    %1047 = vmatpush.msra.mxu0 0.0
    %1048 = vmatpush.msra.mxu0 0.0
    %1049 = vmatpush.msra.mxu0 0.0
    %1050 = vmatpush.msra.mxu0 0.0
    %1051 = vmatpush.msra.mxu0 0.0
    %1052 = vmatpush.msra.mxu0 %v231
    %1053 = vmatpush.msra.mxu0 %v229
    %1054 = vmatpush.msra.mxu0 %v227
    %1055 = vmatpush.msra.mxu0 %v225
    %1056 = vmatpush.msra.mxu0 %v223
    %1057 = vmatpush.msra.mxu0 %v221
    %1058 = vmatpush.msra.mxu0 %v219
    %1059 = vmatpush.msra.mxu0 %v217
    %1060 = vmatmul.f32.gmra.mxu0 %v1042
    %v1061 = vpop.f32.mrf.mxu0
    %v1062 = vadd.f32 %v1040, %v1061
    %1063 = vdwg.mxu0
    %1064 = vmatpush.msra.mxu0 0.0
    %1065 = vmatpush.msra.mxu0 0.0
    %1066 = vmatpush.msra.mxu0 0.0
    %1067 = vmatpush.msra.mxu0 0.0
    %1068 = vmatpush.msra.mxu0 0.0
    %1069 = vmatpush.msra.mxu0 0.0
    %1070 = vmatpush.msra.mxu0 0.0
    %1071 = vmatpush.msra.mxu0 0.0
    %1072 = vmatpush.msra.mxu0 %v232
    %1073 = vmatpush.msra.mxu0 %v230
    %1074 = vmatpush.msra.mxu0 %v228
    %1075 = vmatpush.msra.mxu0 %v226
    %1076 = vmatpush.msra.mxu0 %v224
    %1077 = vmatpush.msra.mxu0 %v222
    %1078 = vmatpush.msra.mxu0 %v220
    %1079 = vmatpush.msra.mxu0 %v218
    %1080 = vmatmul.f32.gmra.mxu0 %v1042
    %v1081 = vpop.f32.mrf.mxu0
    %v1082 = vadd.f32 %v1041, %v1081
    %1083 = vdwg.mxu0
    %v1084 = vxor.u32 %v1062, 2147483648
    %v1085 = vxor.u32 %v1082, 2147483648
    %v1086 = vmul.f32 %v1084, 1.442695
    %v1087 = vpow.pop %v1086
    %v1088 = vmul.f32 %v1085, 1.442695
    %v1089 = vpow.pop %v1088
    %v1090 = vadd.f32 %v1087, 1.0
    %v1091 = vadd.f32 %v1089, 1.0
    %v1092 = vrcp.pop %v1090
    %v1093 = vmul.f32 %v1090, %v1092
    %v1094 = vsub.f32 1.0, %v1093
    %v1095 = vmul.f32 %v1092, %v1094
    %v1096 = vadd.f32 %v1092, %v1095
    %vm1097 = vweird.f32 %v1090
    %vm1098 = vweird.f32 %v1092
    %vm1099 = vmor %vm1097, %vm1098
    %v1100 = vsel %vm1099, %v1092, %v1096
    %v1101 = vand.u32 2147483647, %v1090
    %vm1102 = vcmp.eq.f32.partialorder %v1101, 8.507059e+37
    %v1103 = vand.u32 %v1090, 2147483648
    %v1104 = vor.u32 1.1754944e-38, %v1103
    %v1105 = vsel %vm1102, %v1104, %v1100
    %v1106 = vmul.f32 1.0, %v1105
    %v1107 = vrcp.pop %v1091
    %v1108 = vmul.f32 %v1091, %v1107
    %v1109 = vsub.f32 1.0, %v1108
    %v1110 = vmul.f32 %v1107, %v1109
    %v1111 = vadd.f32 %v1107, %v1110
    %vm1112 = vweird.f32 %v1091
    %vm1113 = vweird.f32 %v1107
    %vm1114 = vmor %vm1112, %vm1113
    %v1115 = vsel %vm1114, %v1107, %v1111
    %v1116 = vand.u32 2147483647, %v1091
    %vm1117 = vcmp.eq.f32.partialorder %v1116, 8.507059e+37
    %v1118 = vand.u32 %v1091, 2147483648
    %v1119 = vor.u32 1.1754944e-38, %v1118
    %v1120 = vsel %vm1117, %v1119, %v1115
    %v1121 = vmul.f32 1.0, %v1120
    %v1122 = vtanh.pop %v1062
    %v1123 = vtanh.pop %v1082
    %v1124 = vsel %vm236, %v1106, %v1122
    %v1125 = vsel %vm237, %v1121, %v1123
    %v1126 = vmul.f32 %v1124, %v1022
    %1128 = vrot.lane.b32.xlu0 %v1125, 64
    %v1129 = vpop.permute.xlu0 %1128
    %v1131 = vmul.f32 %v1124, %v1129
    %1133 = vrot.lane.b32.xlu0 %v1131, 64
    %v1134 = vpop.permute.xlu0 %1133
    %v1136 = vadd.f32 %v1126, %v1134
    %v1137 = vtanh.pop %v1136
    %1139 = vrot.lane.b32.xlu0 %v1137, 64
    %v1140 = vpop.permute.xlu0 %1139
    %v1142 = vmul.f32 %v1125, %v1140
    %s1143 = scalar_lea.vmem [#allocation3], 56
    %1144 = vst.msk [vmem:[%s1143] sm:$0xff] %vm94, %v1142
    %1146 = vrot.lane.b32.xlu0 %v1142, 96
    %v1147 = vpop.permute.xlu0 %1146
    %1149 = vst.msk [vmem:[#allocation4] sm:$0xff] %vm94, %v1147
    %v1150 = vld [vmem:[#allocation3] sm:$0xff]
    %v1151 = vld [vmem:[#allocation3 + $0x8] sm:$0xff]
    %v1152 = vld [vmem:[#allocation3 + $0x10] sm:$0xff]
    %v1153 = vld [vmem:[#allocation3 + $0x18] sm:$0xff]
    %v1154 = vld [vmem:[#allocation3 + $0x20] sm:$0xff]
    %v1155 = vld [vmem:[#allocation3 + $0x28] sm:$0xff]
    %v1156 = vld [vmem:[#allocation3 + $0x30] sm:$0xff]
    %v1157 = vld [vmem:[#allocation3 + $0x38] sm:$0xff]
    %v1158 = vld [vmem:[%s4] sm:$0xff]
    %v1159 = vld [vmem:[%s4 + $0x8] sm:$0xff]
    %v1160 = vld [vmem:[%s4 + $0x10] sm:$0xff]
    %v1161 = vld [vmem:[%s4 + $0x18] sm:$0xff]
    %v1162 = vld [vmem:[#allocation4] sm:$0xff]
    %v1163 = vld [vmem:[#allocation4 + $0x8] sm:$0xff]
    %v1164 = vld [vmem:[#allocation4 + $0x10] sm:$0xff]
    %v1165 = vld [vmem:[#allocation4 + $0x18] sm:$0xff]
    %v1166 = vld [vmem:[#allocation4 + $0x20] sm:$0xff]
    %v1167 = vld [vmem:[#allocation4 + $0x28] sm:$0xff]
    %v1168 = vld [vmem:[#allocation4 + $0x30] sm:$0xff]
    %v1169 = vld [vmem:[#allocation4 + $0x38] sm:$0xff]
    %v1170 = vld [vmem:[#allocation10] sm:$0xff]
    %v1171 = vld [vmem:[#allocation10 + $0x8] sm:$0xff]
    %v1172 = vld [vmem:[#allocation10 + $0x10] sm:$0xff]
    %v1173 = vld [vmem:[#allocation10 + $0x18] sm:$0xff]
    %v1175 = vsel %vm94, %v1162, 0
    %v1178 = vsel %vm94, %v1163, 0
    %v1181 = vsel %vm94, %v1164, 0
    %v1184 = vsel %vm94, %v1165, 0
    %v1187 = vsel %vm94, %v1166, 0
    %v1190 = vsel %vm94, %v1167, 0
    %v1193 = vsel %vm94, %v1168, 0
    %v1196 = vsel %vm94, %v1169, 0
    %1198 = vmatpush.msra.mxu0 0.0
    %1199 = vmatpush.msra.mxu0 0.0
    %1200 = vmatpush.msra.mxu0 0.0
    %1201 = vmatpush.msra.mxu0 0.0
    %1202 = vmatpush.msra.mxu0 0.0
    %1203 = vmatpush.msra.mxu0 0.0
    %1204 = vmatpush.msra.mxu0 0.0
    %1205 = vmatpush.msra.mxu0 0.0
    %1206 = vmatpush.msra.mxu0 0.0
    %1207 = vmatpush.msra.mxu0 0.0
    %1208 = vmatpush.msra.mxu0 0.0
    %1209 = vmatpush.msra.mxu0 0.0
    %1210 = vmatpush.msra.mxu0 %v1173
    %1211 = vmatpush.msra.mxu0 %v1172
    %1212 = vmatpush.msra.mxu0 %v1171
    %1213 = vmatpush.msra.mxu0 %v1170
    %1214 = vmatmul.f32.gmra.mxu0 %v1175
    %v1215 = vpop.f32.mrf.mxu0
    %v1216 = vadd.f32 0.0, %v1215
    %1217 = vmatmul.f32.gmra.mxu0 %v1178
    %v1218 = vpop.f32.mrf.mxu0
    %v1219 = vadd.f32 0.0, %v1218
    %1220 = vmatmul.f32.gmra.mxu0 %v1181
    %v1221 = vpop.f32.mrf.mxu0
    %v1222 = vadd.f32 0.0, %v1221
    %1223 = vmatmul.f32.gmra.mxu0 %v1184
    %v1224 = vpop.f32.mrf.mxu0
    %v1225 = vadd.f32 0.0, %v1224
    %1226 = vmatmul.f32.gmra.mxu0 %v1187
    %v1227 = vpop.f32.mrf.mxu0
    %v1228 = vadd.f32 0.0, %v1227
    %1229 = vmatmul.f32.gmra.mxu0 %v1190
    %v1230 = vpop.f32.mrf.mxu0
    %v1231 = vadd.f32 0.0, %v1230
    %1232 = vmatmul.f32.gmra.mxu0 %v1193
    %v1233 = vpop.f32.mrf.mxu0
    %v1234 = vadd.f32 0.0, %v1233
    %1235 = vmatmul.f32.gmra.mxu0 %v1196
    %v1236 = vpop.f32.mrf.mxu0
    %v1237 = vadd.f32 0.0, %v1236
    %1238 = vdwg.mxu0
    %v1240 = vsel %vm94, %v1150, 0
    %v1243 = vsel %vm94, %v1151, 0
    %v1246 = vsel %vm94, %v1152, 0
    %v1249 = vsel %vm94, %v1153, 0
    %v1252 = vsel %vm94, %v1154, 0
    %v1255 = vsel %vm94, %v1155, 0
    %v1258 = vsel %vm94, %v1156, 0
    %v1261 = vsel %vm94, %v1157, 0
    %1263 = vmatpush.msra.mxu0 0.0
    %1264 = vmatpush.msra.mxu0 0.0
    %1265 = vmatpush.msra.mxu0 0.0
    %1266 = vmatpush.msra.mxu0 0.0
    %1267 = vmatpush.msra.mxu0 0.0
    %1268 = vmatpush.msra.mxu0 0.0
    %1269 = vmatpush.msra.mxu0 0.0
    %1270 = vmatpush.msra.mxu0 0.0
    %1271 = vmatpush.msra.mxu0 0.0
    %1272 = vmatpush.msra.mxu0 0.0
    %1273 = vmatpush.msra.mxu0 0.0
    %1274 = vmatpush.msra.mxu0 0.0
    %1275 = vmatpush.msra.mxu0 %v1161
    %1276 = vmatpush.msra.mxu0 %v1160
    %1277 = vmatpush.msra.mxu0 %v1159
    %1278 = vmatpush.msra.mxu0 %v1158
    %1279 = vmatmul.f32.gmra.mxu0 %v1240
    %v1280 = vpop.f32.mrf.mxu0
    %v1281 = vadd.f32 %v1216, %v1280
    %1282 = vmatmul.f32.gmra.mxu0 %v1243
    %v1283 = vpop.f32.mrf.mxu0
    %v1284 = vadd.f32 %v1219, %v1283
    %1285 = vmatmul.f32.gmra.mxu0 %v1246
    %v1286 = vpop.f32.mrf.mxu0
    %v1287 = vadd.f32 %v1222, %v1286
    %1288 = vmatmul.f32.gmra.mxu0 %v1249
    %v1289 = vpop.f32.mrf.mxu0
    %v1290 = vadd.f32 %v1225, %v1289
    %1291 = vmatmul.f32.gmra.mxu0 %v1252
    %v1292 = vpop.f32.mrf.mxu0
    %v1293 = vadd.f32 %v1228, %v1292
    %1294 = vmatmul.f32.gmra.mxu0 %v1255
    %v1295 = vpop.f32.mrf.mxu0
    %v1296 = vadd.f32 %v1231, %v1295
    %1297 = vmatmul.f32.gmra.mxu0 %v1258
    %v1298 = vpop.f32.mrf.mxu0
    %v1299 = vadd.f32 %v1234, %v1298
    %1300 = vmatmul.f32.gmra.mxu0 %v1261
    %v1301 = vpop.f32.mrf.mxu0
    %v1302 = vadd.f32 %v1237, %v1301
    %1303 = vdwg.mxu0
    %v1304 = vld [vmem:[%s6] sm:$0x1]
    %v1306 = vperm.slane %v1304, 0
    %v1308 = vadd.f32 %v1281, %v1306
    %v1309 = vadd.f32 %v1284, %v1306
    %v1310 = vadd.f32 %v1287, %v1306
    %v1311 = vadd.f32 %v1290, %v1306
    %v1312 = vadd.f32 %v1293, %v1306
    %v1313 = vadd.f32 %v1296, %v1306
    %v1314 = vadd.f32 %v1299, %v1306
    %v1315 = vadd.f32 %v1302, %v1306
    %1316 = vst [vmem:[#allocation11] sm:$0xff] %v1308
    %1317 = vst [vmem:[#allocation11 + $0x8] sm:$0xff] %v1309
    %1318 = vst [vmem:[#allocation11 + $0x10] sm:$0xff] %v1310
    %1319 = vst [vmem:[#allocation11 + $0x18] sm:$0xff] %v1311
    %1320 = vst [vmem:[#allocation11 + $0x20] sm:$0xff] %v1312
    %1321 = vst [vmem:[#allocation11 + $0x28] sm:$0xff] %v1313
    %1322 = vst [vmem:[#allocation11 + $0x30] sm:$0xff] %v1314
    %1323 = vst [vmem:[#allocation11 + $0x38] sm:$0xff] %v1315
    // Predicated region
    $region42: #{tpu_custom_call.1} parent=1 // pred_check
      _
    $region43: #{tpu_custom_call.1} parent=1 // pred_check_branch
      %1325 = sbr.rel (0) target = $region45
    $region44: #{tpu_custom_call.1} parent=1 // pred_region
      %1327 = vsyncadd [#allocation7], 0
      %s1328 = sshll.u32 [#allocation11], 4
      %s1329 = int_to_ptr.vmem [resolvable:$true] %s1328
      %s1330 = sshll.u32 %s7, 4
      %s1331 = int_to_ptr.hbm [resolvable:$true] %s1330
      %1336 = dma.vmem_to_hbm [thread:$0]  %s1329, 1024, %s1331, [#allocation7], 128, 128, 8
    $region45: #{tpu_custom_call.1} parent=1 // pred_fallthru
      _
    // Predicated region
    $region46: #{tpu_custom_call.1} parent=1 // pred_check
      _
    $region47: #{tpu_custom_call.1} parent=1 // pred_check_branch
      %1338 = sbr.rel (0) target = $region49
    $region48: #{tpu_custom_call.1} parent=1 // pred_region
      %1340 = dma.done [#allocation7], 1024
    $region49: #{tpu_custom_call.1} parent=1 // pred_fallthru
      _
    %1341 = vsyncpa [#allocation6], 1
    %1342 = vsyncpa [#allocation9], 1
    %1343 = vsyncpa [#allocation7], 1

</llo_original>
